<compile_context>
chip_gen: v5e
topology: v5e:2x2
jax: 0.10.0
libtpu: 0.0.40
codegen_flags: <defaults>
</compile_context>

<pallas_src>
import functools
import math

import jax
import jax.numpy as jnp
from jax.experimental import pallas as pl
from jax.experimental.pallas import tpu as pltpu


# ----------------------------------------------------------------------------
# Helpers used inside kernels (all f32)
# ----------------------------------------------------------------------------
def _layer_norm(x, g, b, eps):
    mean = jnp.mean(x, axis=-1, keepdims=True)
    var = jnp.mean(jnp.square(x - mean), axis=-1, keepdims=True)
    return (x - mean) * jax.lax.rsqrt(var + eps) * g + b


# ----------------------------------------------------------------------------
# Pallas kernels
# ----------------------------------------------------------------------------
def _embed_kernel(m_ref, nodes_ref, emb_ref, add_ref, g_ref, b_ref, out_ref, *, eps):
    # m_ref:     (1, L, L) float {0,1}  = nodes_mask & token_mask & attention_mask
    # nodes_ref: (1, L, 1) float {0,1}
    # emb_ref:   (1, L, H) word embeddings
    # add_ref:   (1, L, H) position + token_type embeddings
    m = m_ref[0]                                    # (L, L)
    nodes = nodes_ref[0]                            # (L, 1)
    emb = emb_ref[0]                                # (L, H)
    denom = jnp.sum(m, axis=-1, keepdims=True) + 1e-10
    # un-normalized dot, then per-row EUP reciprocal (avoids an (L,L) divide)
    avg = jnp.dot(m, emb, preferred_element_type=jnp.float32)
    avg = avg * pl.reciprocal(denom, approx=True)
    mixed = emb + nodes * (avg - emb)               # select avg where nodes==1
    x = mixed + add_ref[0]
    out_ref[...] = _layer_norm(x, g_ref[...], b_ref[...], eps)[None]


def _layer_kernel(x_ref, bias_ref, wqkv_ref, bqkv_ref, wo_ref, bo_ref,
                  ln1g_ref, ln1b_ref, wi_ref, bi_ref, wo2_ref, bo2_ref,
                  ln2g_ref, ln2b_ref, out_ref, *, n_heads, eps):
    # One full transformer encoder layer for a single batch element.
    # x_ref: (1, L, H) f32; bias_ref: (1, L, L) f32 additive attention mask.
    # Weights are bf16 (MXU), biases / LN params f32.
    L, H = x_ref.shape[1], x_ref.shape[2]
    dH = H // n_heads
    scale = 1.0 / math.sqrt(dH)

    x = x_ref[0]                                    # (L, H) f32
    bias = bias_ref[0]                              # (L, L) f32

    # ---- fused QKV projection (bf16 MXU, f32 accumulate) ----
    xb = x.astype(jnp.bfloat16)
    qkv = jnp.dot(xb, wqkv_ref[...],
                  preferred_element_type=jnp.float32) + bqkv_ref[...]   # (L, 3H)

    # ---- self-attention, all heads in VMEM, lane-dense [L, H] context ----
    ctx_heads = []
    for h in range(n_heads):
        qh = (qkv[:, h * dH:(h + 1) * dH] * scale).astype(jnp.bfloat16)
        kh = qkv[:, H + h * dH:H + (h + 1) * dH].astype(jnp.bfloat16)
        vh = qkv[:, 2 * H + h * dH:2 * H + (h + 1) * dH].astype(jnp.bfloat16)
        s = jax.lax.dot_general(qh, kh, (((1,), (1,)), ((), ())),
                                preferred_element_type=jnp.float32) + bias
        s = s - jnp.max(s, axis=-1, keepdims=True)
        p = jnp.exp(s)
        p = p * pl.reciprocal(jnp.sum(p, axis=-1, keepdims=True), approx=True)
        ctx_heads.append(jnp.dot(p.astype(jnp.bfloat16), vh,
                                 preferred_element_type=jnp.float32))
    ctx = jnp.concatenate(ctx_heads, axis=-1)       # (L, H) f32

    # ---- attention output projection + residual + LayerNorm ----
    attn_out = jnp.dot(ctx.astype(jnp.bfloat16), wo_ref[...],
                       preferred_element_type=jnp.float32) + bo_ref[...]
    h1 = _layer_norm(attn_out + x, ln1g_ref[...], ln1b_ref[...], eps)

    # ---- FFN + residual + LayerNorm ----
    inter = jnp.dot(h1.astype(jnp.bfloat16), wi_ref[...],
                    preferred_element_type=jnp.float32) + bi_ref[...]
    # TODO(synk): HF "gelu" is erf-based; tanh approximation used here (close).
    inter = jax.nn.gelu(inter, approximate=True)
    ffn = jnp.dot(inter.astype(jnp.bfloat16), wo2_ref[...],
                  preferred_element_type=jnp.float32) + bo2_ref[...]
    out = _layer_norm(ffn + h1, ln2g_ref[...], ln2b_ref[...], eps)
    out_ref[...] = out[None]


def _cls_head_kernel(x_ref, w1_ref, b1_ref, w2_ref, b2_ref, o_ref):
    # RobertaClassificationHead (dropout=identity) + softmax over classes.
    x = x_ref[...]                                  # (M, H) f32
    h = jnp.tanh(jnp.dot(x, w1_ref[...],
                         preferred_element_type=jnp.float32) + b1_ref[...])
    logits = jnp.dot(h, w2_ref[...],
                     preferred_element_type=jnp.float32) + b2_ref[...]
    logits = logits - jnp.max(logits, axis=-1, keepdims=True)
    e = jnp.exp(logits)
    o_ref[...] = e * pl.reciprocal(jnp.sum(e, axis=-1, keepdims=True), approx=True)


# ----------------------------------------------------------------------------
# Wrappers around pallas_call
# ----------------------------------------------------------------------------
_VMEM = pl.BlockSpec(memory_space=pltpu.MemorySpace.VMEM)


def embed_mix_ln(m, nodes, word_emb, add_emb, g, b, eps):
    B, L, H = word_emb.shape
    return pl.pallas_call(
        functools.partial(_embed_kernel, eps=eps),
        out_shape=jax.ShapeDtypeStruct((B, L, H), jnp.float32),
        grid=(B,),
        in_specs=[
            pl.BlockSpec((1, L, L), lambda i: (i, 0, 0)),
            pl.BlockSpec((1, L, 1), lambda i: (i, 0, 0)),
            pl.BlockSpec((1, L, H), lambda i: (i, 0, 0)),
            pl.BlockSpec((1, L, H), lambda i: (i, 0, 0)),
            pl.BlockSpec((1, H), lambda i: (0, 0)),
            pl.BlockSpec((1, H), lambda i: (0, 0)),
        ],
        out_specs=pl.BlockSpec((1, L, H), lambda i: (i, 0, 0)),
        compiler_params=pltpu.CompilerParams(dimension_semantics=("parallel",)),
    )(m, nodes, word_emb, add_emb, g, b)


def encoder_layer(x, attn_bias, lp, n_heads, eps):
    B, L, H = x.shape
    I = lp["wi"].shape[1]

    def wspec(shape):
        nd = len(shape)
        return pl.BlockSpec(shape, lambda b, _nd=nd: (0,) * _nd)

    x_spec = pl.BlockSpec((1, L, H), lambda b: (b, 0, 0))
    bias_spec = pl.BlockSpec((1, L, L), lambda b: (b, 0, 0))

    return pl.pallas_call(
        functools.partial(_layer_kernel, n_heads=n_heads, eps=eps),
        out_shape=jax.ShapeDtypeStruct((B, L, H), jnp.float32),
        grid=(B,),
        in_specs=[x_spec, bias_spec,
                  wspec((H, 3 * H)), wspec((1, 3 * H)),
                  wspec((H, H)), wspec((1, H)),
                  wspec((1, H)), wspec((1, H)),
                  wspec((H, I)), wspec((1, I)),
                  wspec((I, H)), wspec((1, H)),
                  wspec((1, H)), wspec((1, H))],
        out_specs=x_spec,
        compiler_params=pltpu.CompilerParams(dimension_semantics=("parallel",)),
    )(x, attn_bias, lp["wqkv"], lp["bqkv"], lp["wo"], lp["bo"],
      lp["ln1_g"], lp["ln1_b"], lp["wi"], lp["bi"], lp["wo2"], lp["bo2"],
      lp["ln2_g"], lp["ln2_b"])


def classification_head(x, w1, b1, w2, b2):
    M = x.shape[0]
    C = w2.shape[1]
    return pl.pallas_call(
        _cls_head_kernel,
        out_shape=jax.ShapeDtypeStruct((M, C), jnp.float32),
        in_specs=[_VMEM] * 5,
        out_specs=_VMEM,
    )(x, w1, b1, w2, b2)


# ----------------------------------------------------------------------------
# Parameters (deterministic synthetic init, matching the module's shapes)
# ----------------------------------------------------------------------------
CFG = dict(
    vocab_size=64,
    max_position=32,
    type_vocab=2,
    hidden_size=32,
    num_heads=4,
    num_layers=2,
    intermediate_size=64,
    num_classes=2,
    layer_norm_eps=1e-5,
    initializer_range=0.02,
    hidden_dropout_prob=0.1,   # identity at inference
)


def init_params(key, cfg):
    H = cfg["hidden_size"]
    I = cfg["intermediate_size"]
    C = cfg["num_classes"]
    keys = iter(jax.random.split(key, 64))
    std = cfg["initializer_range"]

    def nrm(shape, dtype=jnp.float32):
        return (std * jax.random.normal(next(keys), shape, dtype=jnp.float32)).astype(dtype)

    params = {
        "word_embeddings": nrm((cfg["vocab_size"], H)),
        "position_embeddings": nrm((cfg["max_position"], H)),
        "token_type_embeddings": nrm((cfg["type_vocab"], H)),
        "emb_ln_g": jnp.ones((1, H), jnp.float32),
        "emb_ln_b": jnp.zeros((1, H), jnp.float32),
        "layers": [],
        "cls_dense_w": nrm((H, H)),
        "cls_dense_b": jnp.zeros((1, H), jnp.float32),
        "cls_out_w": nrm((H, C)),
        "cls_out_b": jnp.zeros((1, C), jnp.float32),
    }
    for _ in range(cfg["num_layers"]):
        params["layers"].append({
            # fused q|k|v projection weight, bf16 for the MXU
            "wqkv": nrm((H, 3 * H), jnp.bfloat16),
            "bqkv": jnp.zeros((1, 3 * H), jnp.float32),
            "wo": nrm((H, H), jnp.bfloat16), "bo": jnp.zeros((1, H), jnp.float32),
            "ln1_g": jnp.ones((1, H), jnp.float32), "ln1_b": jnp.zeros((1, H), jnp.float32),
            "wi": nrm((H, I), jnp.bfloat16), "bi": jnp.zeros((1, I), jnp.float32),
            "wo2": nrm((I, H), jnp.bfloat16), "bo2": jnp.zeros((1, H), jnp.float32),
            "ln2_g": jnp.ones((1, H), jnp.float32), "ln2_b": jnp.zeros((1, H), jnp.float32),
        })
    return params


# ----------------------------------------------------------------------------
# Forward pass (labels=None branch -> returns prob)
# ----------------------------------------------------------------------------
def graphcodebert_forward(params, inputs_ids, position_idx, attention_mask, cfg):
    B, L = inputs_ids.shape
    H = cfg["hidden_size"]
    eps = cfg["layer_norm_eps"]

    # TODO(synk): embedding gathers stay in JAX (no clean BlockSpec gather here).
    word_emb = jnp.take(params["word_embeddings"], inputs_ids, axis=0)      # (B, L, H)
    pos_emb = jnp.take(params["position_embeddings"], position_idx, axis=0)
    token_type_ids = (position_idx == -1).astype(jnp.int32)
    type_emb = jnp.take(params["token_type_embeddings"], token_type_ids, axis=0)

    nodes = (position_idx == 0)
    token = (position_idx >= 2)
    attn_b = attention_mask.astype(bool)
    mix_mask = (nodes[:, :, None] & token[:, None, :] & attn_b).astype(jnp.float32)
    nodes_f = nodes.astype(jnp.float32)[:, :, None]

    # fused: GraphCodeBERT node->token mixing + (pos+type) add + embeddings LayerNorm
    x = embed_mix_ln(mix_mask, nodes_f, word_emb, pos_emb + type_emb,
                     params["emb_ln_g"], params["emb_ln_b"], eps)            # (B, L, H)

    # extended attention mask -> additive bias (broadcast over heads in-kernel)
    attn_bias = (1.0 - attention_mask.astype(jnp.float32)) * (-1e9)          # (B, L, L)

    # one fused pallas_call per transformer encoder layer
    for lp in params["layers"]:
        x = encoder_layer(x, attn_bias, lp, cfg["num_heads"], eps)

    # fused RobertaClassificationHead + softmax
    prob = classification_head(x.reshape(B * L, H),
                               params["cls_dense_w"], params["cls_dense_b"],
                               params["cls_out_w"], params["cls_out_b"])
    return prob.reshape(B, L, cfg["num_classes"])


# ----------------------------------------------------------------------------
# Main
# ----------------------------------------------------------------------------
if __name__ == "__main__":
    key = jax.random.PRNGKey(0)
    k_param, k_ids = jax.random.split(key)

    B, L = 2, 8
    params = init_params(k_param, CFG)

    inputs_ids = jax.random.randint(k_ids, (B, L), 0, CFG["vocab_size"], dtype=jnp.int32)
    # GraphCodeBERT convention: nodes -> position 0, padding -> 1, tokens -> >= 2
    position_idx = jnp.array([
        [2, 3, 4, 5, 6, 0, 0, 1],
        [2, 3, 4, 5, 0, 0, 1, 1],
    ], dtype=jnp.int32)
    non_pad = (position_idx != 1)
    attention_mask = (non_pad[:, :, None] & non_pad[:, None, :])             # bool (B, L, L)

    fwd = jax.jit(lambda p, i, pos, am: graphcodebert_forward(p, i, pos, am, CFG))
    prob = fwd(params, inputs_ids, position_idx, attention_mask)
    prob = jax.block_until_ready(prob)

    assert prob.shape == (B, L, CFG["num_classes"])
    assert bool(jnp.all(jnp.isfinite(prob)))
    print("KERNEL_OK")
</pallas_src>

<mosaic_0001>
module attributes {stable_mosaic.version = 11 : i64} {
  func.func @_cls_head_kernel(%arg0: memref<16x32xf32, #tpu.memory_space<vmem>>, %arg1: memref<32x32xf32, #tpu.memory_space<vmem>>, %arg2: memref<1x32xf32, #tpu.memory_space<vmem>>, %arg3: memref<32x2xf32, #tpu.memory_space<vmem>>, %arg4: memref<1x2xf32, #tpu.memory_space<vmem>>, %arg5: memref<16x2xf32, #tpu.memory_space<vmem>>) attributes {dimension_semantics = [], scalar_prefetch = 0 : i64, scratch_operands = 0 : i64, tpu.core_type = #tpu.core_type<tc>} {
    %c0 = arith.constant 0 : index
    %c0_0 = arith.constant 0 : index
    %0 = vector.load %arg0[%c0, %c0_0] : memref<16x32xf32, #tpu.memory_space<vmem>>, vector<16x32xf32>
    %c0_1 = arith.constant 0 : index
    %c0_2 = arith.constant 0 : index
    %1 = vector.load %arg1[%c0_1, %c0_2] : memref<32x32xf32, #tpu.memory_space<vmem>>, vector<32x32xf32>
    %cst = arith.constant dense<0.000000e+00> : vector<16x32xf32>
    %2 = tpu.matmul %0, %1, %cst {dimension_numbers = #tpu.dot_dimension_numbers<[1], [0], [0], [1], [0, 0, 1, 1], [], []>} : vector<16x32xf32>, vector<32x32xf32>, vector<16x32xf32> -> vector<16x32xf32>
    %c0_3 = arith.constant 0 : index
    %c0_4 = arith.constant 0 : index
    %3 = vector.load %arg2[%c0_3, %c0_4] : memref<1x32xf32, #tpu.memory_space<vmem>>, vector<1x32xf32>
    %4 = vector.broadcast %3 : vector<1x32xf32> to vector<16x32xf32>
    %5 = arith.addf %2, %4 : vector<16x32xf32>
    %6 = math.tanh %5 : vector<16x32xf32>
    %c0_5 = arith.constant 0 : index
    %c0_6 = arith.constant 0 : index
    %7 = vector.load %arg3[%c0_5, %c0_6] : memref<32x2xf32, #tpu.memory_space<vmem>>, vector<32x2xf32>
    %cst_7 = arith.constant dense<0.000000e+00> : vector<16x2xf32>
    %8 = tpu.matmul %6, %7, %cst_7 {dimension_numbers = #tpu.dot_dimension_numbers<[1], [0], [0], [1], [0, 0, 1, 1], [], []>} : vector<16x32xf32>, vector<32x2xf32>, vector<16x2xf32> -> vector<16x2xf32>
    %c0_8 = arith.constant 0 : index
    %c0_9 = arith.constant 0 : index
    %9 = vector.load %arg4[%c0_8, %c0_9] : memref<1x2xf32, #tpu.memory_space<vmem>>, vector<1x2xf32>
    %10 = vector.broadcast %9 : vector<1x2xf32> to vector<16x2xf32>
    %11 = arith.addf %8, %10 : vector<16x2xf32>
    %cst_10 = arith.constant dense<0xFF800000> : vector<16xf32>
    %12 = vector.multi_reduction <maximumf>, %11, %cst_10 [1] : vector<16x2xf32> to vector<16xf32>
    %13 = vector.shape_cast %12 : vector<16xf32> to vector<16x1xf32>
    %14 = vector.broadcast %13 : vector<16x1xf32> to vector<16x2xf32>
    %15 = arith.subf %11, %14 : vector<16x2xf32>
    %16 = math.exp %15 : vector<16x2xf32>
    %cst_11 = arith.constant dense<0.000000e+00> : vector<16xf32>
    %17 = vector.multi_reduction <add>, %16, %cst_11 [1] : vector<16x2xf32> to vector<16xf32>
    %18 = vector.shape_cast %17 : vector<16xf32> to vector<16x1xf32>
    %19 = tpu.reciprocal %18 {approx = true} : vector<16x1xf32> -> vector<16x1xf32>
    %20 = vector.broadcast %19 : vector<16x1xf32> to vector<16x2xf32>
    %21 = arith.mulf %16, %20 : vector<16x2xf32>
    %c0_12 = arith.constant 0 : index
    %c0_13 = arith.constant 0 : index
    %22 = vector.load %arg5[%c0_12, %c0_13] : memref<16x2xf32, #tpu.memory_space<vmem>>, vector<16x2xf32>
    tpu.vector_store %arg5[%c0_12, %c0_13], %21 {strides = array<i32>} : memref<16x2xf32, #tpu.memory_space<vmem>>, vector<16x2xf32>,
    return
  }
}

module attributes {stable_mosaic.version = 11 : i64} {
  func.func @_embed_kernel(%arg0: i32, %arg1: memref<1x8x8xf32, #tpu.memory_space<vmem>>, %arg2: memref<1x8x1xf32, #tpu.memory_space<vmem>>, %arg3: memref<1x8x32xf32, #tpu.memory_space<vmem>>, %arg4: memref<1x8x32xf32, #tpu.memory_space<vmem>>, %arg5: memref<1x32xf32, #tpu.memory_space<vmem>>, %arg6: memref<1x32xf32, #tpu.memory_space<vmem>>, %arg7: memref<1x8x32xf32, #tpu.memory_space<vmem>>) attributes {dimension_semantics = [#tpu.dimension_semantics<parallel>], iteration_bounds = array<i64: 2>, scalar_prefetch = 0 : i64, scratch_operands = 0 : i64, tpu.core_type = #tpu.core_type<tc>, window_params = [{transform_indices = @transform_0, window_bounds = array<i64: 1, 8, 8>}, {transform_indices = @transform_1, window_bounds = array<i64: 1, 8, 1>}, {transform_indices = @transform_2, window_bounds = array<i64: 1, 8, 32>}, {transform_indices = @transform_3, window_bounds = array<i64: 1, 8, 32>}, {pipeline_mode = #tpu.pipeline_mode<synchronous>, transform_indices = @transform_4, window_bounds = array<i64: 1, 32>}, {pipeline_mode = #tpu.pipeline_mode<synchronous>, transform_indices = @transform_5, window_bounds = array<i64: 1, 32>}, {transform_indices = @transform_6, window_bounds = array<i64: 1, 8, 32>}]} {
    %c0 = arith.constant 0 : index
    %c0_0 = arith.constant 0 : index
    %c0_1 = arith.constant 0 : index
    %0 = vector.load %arg1[%c0, %c0_0, %c0_1] : memref<1x8x8xf32, #tpu.memory_space<vmem>>, vector<1x8x8xf32>
    %1 = vector.shape_cast %0 : vector<1x8x8xf32> to vector<8x8xf32>
    %c0_2 = arith.constant 0 : index
    %c0_3 = arith.constant 0 : index
    %c0_4 = arith.constant 0 : index
    %2 = vector.load %arg2[%c0_2, %c0_3, %c0_4] : memref<1x8x1xf32, #tpu.memory_space<vmem>>, vector<1x8x1xf32>
    %3 = vector.shape_cast %2 : vector<1x8x1xf32> to vector<8x1xf32>
    %c0_5 = arith.constant 0 : index
    %c0_6 = arith.constant 0 : index
    %c0_7 = arith.constant 0 : index
    %4 = vector.load %arg3[%c0_5, %c0_6, %c0_7] : memref<1x8x32xf32, #tpu.memory_space<vmem>>, vector<1x8x32xf32>
    %5 = vector.shape_cast %4 : vector<1x8x32xf32> to vector<8x32xf32>
    %cst = arith.constant dense<0.000000e+00> : vector<8xf32>
    %6 = vector.multi_reduction <add>, %1, %cst [1] : vector<8x8xf32> to vector<8xf32>
    %7 = vector.shape_cast %6 : vector<8xf32> to vector<8x1xf32>
    %cst_8 = arith.constant 1.000000e-10 : f32
    %8 = vector.broadcast %cst_8 : f32 to vector<8x1xf32>
    %9 = arith.addf %7, %8 : vector<8x1xf32>
    %cst_9 = arith.constant dense<0.000000e+00> : vector<8x32xf32>
    %10 = tpu.matmul %1, %5, %cst_9 {dimension_numbers = #tpu.dot_dimension_numbers<[1], [0], [0], [1], [0, 0, 1, 1], [], []>} : vector<8x8xf32>, vector<8x32xf32>, vector<8x32xf32> -> vector<8x32xf32>
    %11 = tpu.reciprocal %9 {approx = true} : vector<8x1xf32> -> vector<8x1xf32>
    %12 = vector.broadcast %11 : vector<8x1xf32> to vector<8x32xf32>
    %13 = arith.mulf %10, %12 : vector<8x32xf32>
    %14 = arith.subf %13, %5 : vector<8x32xf32>
    %15 = vector.broadcast %3 : vector<8x1xf32> to vector<8x32xf32>
    %16 = arith.mulf %15, %14 : vector<8x32xf32>
    %17 = arith.addf %5, %16 : vector<8x32xf32>
    %c0_10 = arith.constant 0 : index
    %c0_11 = arith.constant 0 : index
    %c0_12 = arith.constant 0 : index
    %18 = vector.load %arg4[%c0_10, %c0_11, %c0_12] : memref<1x8x32xf32, #tpu.memory_space<vmem>>, vector<1x8x32xf32>
    %19 = vector.shape_cast %18 : vector<1x8x32xf32> to vector<8x32xf32>
    %20 = arith.addf %17, %19 : vector<8x32xf32>
    %c0_13 = arith.constant 0 : index
    %c0_14 = arith.constant 0 : index
    %21 = vector.load %arg5[%c0_13, %c0_14] : memref<1x32xf32, #tpu.memory_space<vmem>>, vector<1x32xf32>
    %c0_15 = arith.constant 0 : index
    %c0_16 = arith.constant 0 : index
    %22 = vector.load %arg6[%c0_15, %c0_16] : memref<1x32xf32, #tpu.memory_space<vmem>>, vector<1x32xf32>
    %cst_17 = arith.constant dense<0.000000e+00> : vector<8xf32>
    %23 = vector.multi_reduction <add>, %20, %cst_17 [1] : vector<8x32xf32> to vector<8xf32>
    %24 = vector.shape_cast %23 : vector<8xf32> to vector<8x1xf32>
    %cst_18 = arith.constant 3.200000e+01 : f32
    %25 = vector.broadcast %cst_18 : f32 to vector<8x1xf32>
    %26 = arith.divf %24, %25 : vector<8x1xf32>
    %27 = vector.broadcast %26 : vector<8x1xf32> to vector<8x32xf32>
    %28 = arith.subf %20, %27 : vector<8x32xf32>
    %29 = arith.mulf %28, %28 : vector<8x32xf32>
    %cst_19 = arith.constant dense<0.000000e+00> : vector<8xf32>
    %30 = vector.multi_reduction <add>, %29, %cst_19 [1] : vector<8x32xf32> to vector<8xf32>
    %31 = vector.shape_cast %30 : vector<8xf32> to vector<8x1xf32>
    %cst_20 = arith.constant 3.200000e+01 : f32
    %32 = vector.broadcast %cst_20 : f32 to vector<8x1xf32>
    %33 = arith.divf %31, %32 : vector<8x1xf32>
    %34 = vector.broadcast %26 : vector<8x1xf32> to vector<8x32xf32>
    %35 = arith.subf %20, %34 : vector<8x32xf32>
    %cst_21 = arith.constant 9.99999974E-6 : f32
    %36 = vector.broadcast %cst_21 : f32 to vector<8x1xf32>
    %37 = arith.addf %33, %36 : vector<8x1xf32>
    %38 = math.rsqrt %37 : vector<8x1xf32>
    %39 = vector.broadcast %38 : vector<8x1xf32> to vector<8x32xf32>
    %40 = arith.mulf %35, %39 : vector<8x32xf32>
    %41 = vector.broadcast %21 : vector<1x32xf32> to vector<8x32xf32>
    %42 = arith.mulf %40, %41 : vector<8x32xf32>
    %43 = vector.broadcast %22 : vector<1x32xf32> to vector<8x32xf32>
    %44 = arith.addf %42, %43 : vector<8x32xf32>
    %45 = vector.shape_cast %44 : vector<8x32xf32> to vector<1x8x32xf32>
    %c0_22 = arith.constant 0 : index
    %c0_23 = arith.constant 0 : index
    %c0_24 = arith.constant 0 : index
    %46 = vector.load %arg7[%c0_22, %c0_23, %c0_24] : memref<1x8x32xf32, #tpu.memory_space<vmem>>, vector<1x8x32xf32>
    tpu.vector_store %arg7[%c0_22, %c0_23, %c0_24], %45 {strides = array<i32>} : memref<1x8x32xf32, #tpu.memory_space<vmem>>, vector<1x8x32xf32>,
    return
  }
  func.func @transform_0(%arg0: i32) -> (i32, i32, i32) {
    %c0_i32 = arith.constant 0 : i32
    %c0_i32_0 = arith.constant 0 : i32
    %c0_i32_1 = arith.constant 0 : i32
    return %arg0, %c0_i32, %c0_i32_0 : i32, i32, i32
  }
  func.func @transform_1(%arg0: i32) -> (i32, i32, i32) {
    %c0_i32 = arith.constant 0 : i32
    %c0_i32_0 = arith.constant 0 : i32
    %c0_i32_1 = arith.constant 0 : i32
    return %arg0, %c0_i32, %c0_i32_0 : i32, i32, i32
  }
  func.func @transform_2(%arg0: i32) -> (i32, i32, i32) {
    %c0_i32 = arith.constant 0 : i32
    %c0_i32_0 = arith.constant 0 : i32
    %c0_i32_1 = arith.constant 0 : i32
    return %arg0, %c0_i32, %c0_i32_0 : i32, i32, i32
  }
  func.func @transform_3(%arg0: i32) -> (i32, i32, i32) {
    %c0_i32 = arith.constant 0 : i32
    %c0_i32_0 = arith.constant 0 : i32
    %c0_i32_1 = arith.constant 0 : i32
    return %arg0, %c0_i32, %c0_i32_0 : i32, i32, i32
  }
  func.func @transform_4(%arg0: i32) -> (i32, i32) {
    %c0_i32 = arith.constant 0 : i32
    %c0_i32_0 = arith.constant 0 : i32
    %c0_i32_1 = arith.constant 0 : i32
    return %c0_i32, %c0_i32_0 : i32, i32
  }
  func.func @transform_5(%arg0: i32) -> (i32, i32) {
    %c0_i32 = arith.constant 0 : i32
    %c0_i32_0 = arith.constant 0 : i32
    %c0_i32_1 = arith.constant 0 : i32
    return %c0_i32, %c0_i32_0 : i32, i32
  }
  func.func @transform_6(%arg0: i32) -> (i32, i32, i32) {
    %c0_i32 = arith.constant 0 : i32
    %c0_i32_0 = arith.constant 0 : i32
    %c0_i32_1 = arith.constant 0 : i32
    return %arg0, %c0_i32, %c0_i32_0 : i32, i32, i32
  }
}

module attributes {stable_mosaic.version = 11 : i64} {
  func.func @_layer_kernel(%arg0: i32, %arg1: memref<1x8x32xf32, #tpu.memory_space<vmem>>, %arg2: memref<1x8x8xf32, #tpu.memory_space<vmem>>, %arg3: memref<32x96xbf16, #tpu.memory_space<vmem>>, %arg4: memref<1x96xf32, #tpu.memory_space<vmem>>, %arg5: memref<32x32xbf16, #tpu.memory_space<vmem>>, %arg6: memref<1x32xf32, #tpu.memory_space<vmem>>, %arg7: memref<1x32xf32, #tpu.memory_space<vmem>>, %arg8: memref<1x32xf32, #tpu.memory_space<vmem>>, %arg9: memref<32x64xbf16, #tpu.memory_space<vmem>>, %arg10: memref<1x64xf32, #tpu.memory_space<vmem>>, %arg11: memref<64x32xbf16, #tpu.memory_space<vmem>>, %arg12: memref<1x32xf32, #tpu.memory_space<vmem>>, %arg13: memref<1x32xf32, #tpu.memory_space<vmem>>, %arg14: memref<1x32xf32, #tpu.memory_space<vmem>>, %arg15: memref<1x8x32xf32, #tpu.memory_space<vmem>>) attributes {dimension_semantics = [#tpu.dimension_semantics<parallel>], iteration_bounds = array<i64: 2>, scalar_prefetch = 0 : i64, scratch_operands = 0 : i64, tpu.core_type = #tpu.core_type<tc>, window_params = [{transform_indices = @transform_0, window_bounds = array<i64: 1, 8, 32>}, {transform_indices = @transform_1, window_bounds = array<i64: 1, 8, 8>}, {pipeline_mode = #tpu.pipeline_mode<synchronous>, transform_indices = @transform_2, window_bounds = array<i64: 32, 96>}, {pipeline_mode = #tpu.pipeline_mode<synchronous>, transform_indices = @transform_3, window_bounds = array<i64: 1, 96>}, {pipeline_mode = #tpu.pipeline_mode<synchronous>, transform_indices = @transform_4, window_bounds = array<i64: 32, 32>}, {pipeline_mode = #tpu.pipeline_mode<synchronous>, transform_indices = @transform_5, window_bounds = array<i64: 1, 32>}, {pipeline_mode = #tpu.pipeline_mode<synchronous>, transform_indices = @transform_6, window_bounds = array<i64: 1, 32>}, {pipeline_mode = #tpu.pipeline_mode<synchronous>, transform_indices = @transform_7, window_bounds = array<i64: 1, 32>}, {pipeline_mode = #tpu.pipeline_mode<synchronous>, transform_indices = @transform_8, window_bounds = array<i64: 32, 64>}, {pipeline_mode = #tpu.pipeline_mode<synchronous>, transform_indices = @transform_9, window_bounds = array<i64: 1, 64>}, {pipeline_mode = #tpu.pipeline_mode<synchronous>, transform_indices = @transform_10, window_bounds = array<i64: 64, 32>}, {pipeline_mode = #tpu.pipeline_mode<synchronous>, transform_indices = @transform_11, window_bounds = array<i64: 1, 32>}, {pipeline_mode = #tpu.pipeline_mode<synchronous>, transform_indices = @transform_12, window_bounds = array<i64: 1, 32>}, {pipeline_mode = #tpu.pipeline_mode<synchronous>, transform_indices = @transform_13, window_bounds = array<i64: 1, 32>}, {transform_indices = @transform_14, window_bounds = array<i64: 1, 8, 32>}]} {
    %c0 = arith.constant 0 : index
    %c0_0 = arith.constant 0 : index
    %c0_1 = arith.constant 0 : index
    %0 = vector.load %arg1[%c0, %c0_0, %c0_1] : memref<1x8x32xf32, #tpu.memory_space<vmem>>, vector<1x8x32xf32>
    %1 = vector.shape_cast %0 : vector<1x8x32xf32> to vector<8x32xf32>
    %c0_2 = arith.constant 0 : index
    %c0_3 = arith.constant 0 : index
    %c0_4 = arith.constant 0 : index
    %2 = vector.load %arg2[%c0_2, %c0_3, %c0_4] : memref<1x8x8xf32, #tpu.memory_space<vmem>>, vector<1x8x8xf32>
    %3 = vector.shape_cast %2 : vector<1x8x8xf32> to vector<8x8xf32>
    %4 = arith.truncf %1 : vector<8x32xf32> to vector<8x32xbf16>
    %c0_5 = arith.constant 0 : index
    %c0_6 = arith.constant 0 : index
    %5 = vector.load %arg3[%c0_5, %c0_6] : memref<32x96xbf16, #tpu.memory_space<vmem>>, vector<32x96xbf16>
    %cst = arith.constant dense<0.000000e+00> : vector<8x96xf32>
    %6 = tpu.matmul %4, %5, %cst {dimension_numbers = #tpu.dot_dimension_numbers<[1], [0], [0], [1], [0, 0, 1, 1], [], []>} : vector<8x32xbf16>, vector<32x96xbf16>, vector<8x96xf32> -> vector<8x96xf32>
    %c0_7 = arith.constant 0 : index
    %c0_8 = arith.constant 0 : index
    %7 = vector.load %arg4[%c0_7, %c0_8] : memref<1x96xf32, #tpu.memory_space<vmem>>, vector<1x96xf32>
    %8 = vector.broadcast %7 : vector<1x96xf32> to vector<8x96xf32>
    %9 = arith.addf %6, %8 : vector<8x96xf32>
    %10 = vector.extract_strided_slice %9 {offsets = [0, 0], sizes = [8, 8], strides = [1, 1]} : vector<8x96xf32> to vector<8x8xf32>
    %cst_9 = arith.constant 0.353553385 : f32
    %11 = vector.broadcast %cst_9 : f32 to vector<8x8xf32>
    %12 = arith.mulf %10, %11 : vector<8x8xf32>
    %13 = arith.truncf %12 : vector<8x8xf32> to vector<8x8xbf16>
    %14 = vector.extract_strided_slice %9 {offsets = [0, 32], sizes = [8, 8], strides = [1, 1]} : vector<8x96xf32> to vector<8x8xf32>
    %15 = arith.truncf %14 : vector<8x8xf32> to vector<8x8xbf16>
    %16 = vector.extract_strided_slice %9 {offsets = [0, 64], sizes = [8, 8], strides = [1, 1]} : vector<8x96xf32> to vector<8x8xf32>
    %17 = arith.truncf %16 : vector<8x8xf32> to vector<8x8xbf16>
    %cst_10 = arith.constant dense<0.000000e+00> : vector<8x8xf32>
    %18 = tpu.matmul %13, %15, %cst_10 {dimension_numbers = #tpu.dot_dimension_numbers<[1], [1], [0], [0], [0, 0, 1, 0], [], []>} : vector<8x8xbf16>, vector<8x8xbf16>, vector<8x8xf32> -> vector<8x8xf32>
    %19 = arith.addf %18, %3 : vector<8x8xf32>
    %cst_11 = arith.constant dense<0xFF800000> : vector<8xf32>
    %20 = vector.multi_reduction <maximumf>, %19, %cst_11 [1] : vector<8x8xf32> to vector<8xf32>
    %21 = vector.shape_cast %20 : vector<8xf32> to vector<8x1xf32>
    %22 = vector.broadcast %21 : vector<8x1xf32> to vector<8x8xf32>
    %23 = arith.subf %19, %22 : vector<8x8xf32>
    %24 = math.exp %23 : vector<8x8xf32>
    %cst_12 = arith.constant dense<0.000000e+00> : vector<8xf32>
    %25 = vector.multi_reduction <add>, %24, %cst_12 [1] : vector<8x8xf32> to vector<8xf32>
    %26 = vector.shape_cast %25 : vector<8xf32> to vector<8x1xf32>
    %27 = tpu.reciprocal %26 {approx = true} : vector<8x1xf32> -> vector<8x1xf32>
    %28 = vector.broadcast %27 : vector<8x1xf32> to vector<8x8xf32>
    %29 = arith.mulf %24, %28 : vector<8x8xf32>
    %30 = arith.truncf %29 : vector<8x8xf32> to vector<8x8xbf16>
    %cst_13 = arith.constant dense<0.000000e+00> : vector<8x8xf32>
    %31 = tpu.matmul %30, %17, %cst_13 {dimension_numbers = #tpu.dot_dimension_numbers<[1], [0], [0], [1], [0, 0, 1, 1], [], []>} : vector<8x8xbf16>, vector<8x8xbf16>, vector<8x8xf32> -> vector<8x8xf32>
    %32 = vector.extract_strided_slice %9 {offsets = [0, 8], sizes = [8, 8], strides = [1, 1]} : vector<8x96xf32> to vector<8x8xf32>
    %cst_14 = arith.constant 0.353553385 : f32
    %33 = vector.broadcast %cst_14 : f32 to vector<8x8xf32>
    %34 = arith.mulf %32, %33 : vector<8x8xf32>
    %35 = arith.truncf %34 : vector<8x8xf32> to vector<8x8xbf16>
    %36 = vector.extract_strided_slice %9 {offsets = [0, 40], sizes = [8, 8], strides = [1, 1]} : vector<8x96xf32> to vector<8x8xf32>
    %37 = arith.truncf %36 : vector<8x8xf32> to vector<8x8xbf16>
    %38 = vector.extract_strided_slice %9 {offsets = [0, 72], sizes = [8, 8], strides = [1, 1]} : vector<8x96xf32> to vector<8x8xf32>
    %39 = arith.truncf %38 : vector<8x8xf32> to vector<8x8xbf16>
    %cst_15 = arith.constant dense<0.000000e+00> : vector<8x8xf32>
    %40 = tpu.matmul %35, %37, %cst_15 {dimension_numbers = #tpu.dot_dimension_numbers<[1], [1], [0], [0], [0, 0, 1, 0], [], []>} : vector<8x8xbf16>, vector<8x8xbf16>, vector<8x8xf32> -> vector<8x8xf32>
    %41 = arith.addf %40, %3 : vector<8x8xf32>
    %cst_16 = arith.constant dense<0xFF800000> : vector<8xf32>
    %42 = vector.multi_reduction <maximumf>, %41, %cst_16 [1] : vector<8x8xf32> to vector<8xf32>
    %43 = vector.shape_cast %42 : vector<8xf32> to vector<8x1xf32>
    %44 = vector.broadcast %43 : vector<8x1xf32> to vector<8x8xf32>
    %45 = arith.subf %41, %44 : vector<8x8xf32>
    %46 = math.exp %45 : vector<8x8xf32>
    %cst_17 = arith.constant dense<0.000000e+00> : vector<8xf32>
    %47 = vector.multi_reduction <add>, %46, %cst_17 [1] : vector<8x8xf32> to vector<8xf32>
    %48 = vector.shape_cast %47 : vector<8xf32> to vector<8x1xf32>
    %49 = tpu.reciprocal %48 {approx = true} : vector<8x1xf32> -> vector<8x1xf32>
    %50 = vector.broadcast %49 : vector<8x1xf32> to vector<8x8xf32>
    %51 = arith.mulf %46, %50 : vector<8x8xf32>
    %52 = arith.truncf %51 : vector<8x8xf32> to vector<8x8xbf16>
    %cst_18 = arith.constant dense<0.000000e+00> : vector<8x8xf32>
    %53 = tpu.matmul %52, %39, %cst_18 {dimension_numbers = #tpu.dot_dimension_numbers<[1], [0], [0], [1], [0, 0, 1, 1], [], []>} : vector<8x8xbf16>, vector<8x8xbf16>, vector<8x8xf32> -> vector<8x8xf32>
    %54 = vector.extract_strided_slice %9 {offsets = [0, 16], sizes = [8, 8], strides = [1, 1]} : vector<8x96xf32> to vector<8x8xf32>
    %cst_19 = arith.constant 0.353553385 : f32
    %55 = vector.broadcast %cst_19 : f32 to vector<8x8xf32>
    %56 = arith.mulf %54, %55 : vector<8x8xf32>
    %57 = arith.truncf %56 : vector<8x8xf32> to vector<8x8xbf16>
    %58 = vector.extract_strided_slice %9 {offsets = [0, 48], sizes = [8, 8], strides = [1, 1]} : vector<8x96xf32> to vector<8x8xf32>
    %59 = arith.truncf %58 : vector<8x8xf32> to vector<8x8xbf16>
    %60 = vector.extract_strided_slice %9 {offsets = [0, 80], sizes = [8, 8], strides = [1, 1]} : vector<8x96xf32> to vector<8x8xf32>
    %61 = arith.truncf %60 : vector<8x8xf32> to vector<8x8xbf16>
    %cst_20 = arith.constant dense<0.000000e+00> : vector<8x8xf32>
    %62 = tpu.matmul %57, %59, %cst_20 {dimension_numbers = #tpu.dot_dimension_numbers<[1], [1], [0], [0], [0, 0, 1, 0], [], []>} : vector<8x8xbf16>, vector<8x8xbf16>, vector<8x8xf32> -> vector<8x8xf32>
    %63 = arith.addf %62, %3 : vector<8x8xf32>
    %cst_21 = arith.constant dense<0xFF800000> : vector<8xf32>
    %64 = vector.multi_reduction <maximumf>, %63, %cst_21 [1] : vector<8x8xf32> to vector<8xf32>
    %65 = vector.shape_cast %64 : vector<8xf32> to vector<8x1xf32>
    %66 = vector.broadcast %65 : vector<8x1xf32> to vector<8x8xf32>
    %67 = arith.subf %63, %66 : vector<8x8xf32>
    %68 = math.exp %67 : vector<8x8xf32>
    %cst_22 = arith.constant dense<0.000000e+00> : vector<8xf32>
    %69 = vector.multi_reduction <add>, %68, %cst_22 [1] : vector<8x8xf32> to vector<8xf32>
    %70 = vector.shape_cast %69 : vector<8xf32> to vector<8x1xf32>
    %71 = tpu.reciprocal %70 {approx = true} : vector<8x1xf32> -> vector<8x1xf32>
    %72 = vector.broadcast %71 : vector<8x1xf32> to vector<8x8xf32>
    %73 = arith.mulf %68, %72 : vector<8x8xf32>
    %74 = arith.truncf %73 : vector<8x8xf32> to vector<8x8xbf16>
    %cst_23 = arith.constant dense<0.000000e+00> : vector<8x8xf32>
    %75 = tpu.matmul %74, %61, %cst_23 {dimension_numbers = #tpu.dot_dimension_numbers<[1], [0], [0], [1], [0, 0, 1, 1], [], []>} : vector<8x8xbf16>, vector<8x8xbf16>, vector<8x8xf32> -> vector<8x8xf32>
    %76 = vector.extract_strided_slice %9 {offsets = [0, 24], sizes = [8, 8], strides = [1, 1]} : vector<8x96xf32> to vector<8x8xf32>
    %cst_24 = arith.constant 0.353553385 : f32
    %77 = vector.broadcast %cst_24 : f32 to vector<8x8xf32>
    %78 = arith.mulf %76, %77 : vector<8x8xf32>
    %79 = arith.truncf %78 : vector<8x8xf32> to vector<8x8xbf16>
    %80 = vector.extract_strided_slice %9 {offsets = [0, 56], sizes = [8, 8], strides = [1, 1]} : vector<8x96xf32> to vector<8x8xf32>
    %81 = arith.truncf %80 : vector<8x8xf32> to vector<8x8xbf16>
    %82 = vector.extract_strided_slice %9 {offsets = [0, 88], sizes = [8, 8], strides = [1, 1]} : vector<8x96xf32> to vector<8x8xf32>
    %83 = arith.truncf %82 : vector<8x8xf32> to vector<8x8xbf16>
    %cst_25 = arith.constant dense<0.000000e+00> : vector<8x8xf32>
    %84 = tpu.matmul %79, %81, %cst_25 {dimension_numbers = #tpu.dot_dimension_numbers<[1], [1], [0], [0], [0, 0, 1, 0], [], []>} : vector<8x8xbf16>, vector<8x8xbf16>, vector<8x8xf32> -> vector<8x8xf32>
    %85 = arith.addf %84, %3 : vector<8x8xf32>
    %cst_26 = arith.constant dense<0xFF800000> : vector<8xf32>
    %86 = vector.multi_reduction <maximumf>, %85, %cst_26 [1] : vector<8x8xf32> to vector<8xf32>
    %87 = vector.shape_cast %86 : vector<8xf32> to vector<8x1xf32>
    %88 = vector.broadcast %87 : vector<8x1xf32> to vector<8x8xf32>
    %89 = arith.subf %85, %88 : vector<8x8xf32>
    %90 = math.exp %89 : vector<8x8xf32>
    %cst_27 = arith.constant dense<0.000000e+00> : vector<8xf32>
    %91 = vector.multi_reduction <add>, %90, %cst_27 [1] : vector<8x8xf32> to vector<8xf32>
    %92 = vector.shape_cast %91 : vector<8xf32> to vector<8x1xf32>
    %93 = tpu.reciprocal %92 {approx = true} : vector<8x1xf32> -> vector<8x1xf32>
    %94 = vector.broadcast %93 : vector<8x1xf32> to vector<8x8xf32>
    %95 = arith.mulf %90, %94 : vector<8x8xf32>
    %96 = arith.truncf %95 : vector<8x8xf32> to vector<8x8xbf16>
    %cst_28 = arith.constant dense<0.000000e+00> : vector<8x8xf32>
    %97 = tpu.matmul %96, %83, %cst_28 {dimension_numbers = #tpu.dot_dimension_numbers<[1], [0], [0], [1], [0, 0, 1, 1], [], []>} : vector<8x8xbf16>, vector<8x8xbf16>, vector<8x8xf32> -> vector<8x8xf32>
    %98 = tpu.concatenate %31, %53, %75, %97 in 1 : vector<8x8xf32>, vector<8x8xf32>, vector<8x8xf32>, vector<8x8xf32> -> vector<8x32xf32>
    %99 = arith.truncf %98 : vector<8x32xf32> to vector<8x32xbf16>
    %c0_29 = arith.constant 0 : index
    %c0_30 = arith.constant 0 : index
    %100 = vector.load %arg5[%c0_29, %c0_30] : memref<32x32xbf16, #tpu.memory_space<vmem>>, vector<32x32xbf16>
    %cst_31 = arith.constant dense<0.000000e+00> : vector<8x32xf32>
    %101 = tpu.matmul %99, %100, %cst_31 {dimension_numbers = #tpu.dot_dimension_numbers<[1], [0], [0], [1], [0, 0, 1, 1], [], []>} : vector<8x32xbf16>, vector<32x32xbf16>, vector<8x32xf32> -> vector<8x32xf32>
    %c0_32 = arith.constant 0 : index
    %c0_33 = arith.constant 0 : index
    %102 = vector.load %arg6[%c0_32, %c0_33] : memref<1x32xf32, #tpu.memory_space<vmem>>, vector<1x32xf32>
    %103 = vector.broadcast %102 : vector<1x32xf32> to vector<8x32xf32>
    %104 = arith.addf %101, %103 : vector<8x32xf32>
    %105 = arith.addf %104, %1 : vector<8x32xf32>
    %c0_34 = arith.constant 0 : index
    %c0_35 = arith.constant 0 : index
    %106 = vector.load %arg7[%c0_34, %c0_35] : memref<1x32xf32, #tpu.memory_space<vmem>>, vector<1x32xf32>
    %c0_36 = arith.constant 0 : index
    %c0_37 = arith.constant 0 : index
    %107 = vector.load %arg8[%c0_36, %c0_37] : memref<1x32xf32, #tpu.memory_space<vmem>>, vector<1x32xf32>
    %cst_38 = arith.constant dense<0.000000e+00> : vector<8xf32>
    %108 = vector.multi_reduction <add>, %105, %cst_38 [1] : vector<8x32xf32> to vector<8xf32>
    %109 = vector.shape_cast %108 : vector<8xf32> to vector<8x1xf32>
    %cst_39 = arith.constant 3.200000e+01 : f32
    %110 = vector.broadcast %cst_39 : f32 to vector<8x1xf32>
    %111 = arith.divf %109, %110 : vector<8x1xf32>
    %112 = vector.broadcast %111 : vector<8x1xf32> to vector<8x32xf32>
    %113 = arith.subf %105, %112 : vector<8x32xf32>
    %114 = arith.mulf %113, %113 : vector<8x32xf32>
    %cst_40 = arith.constant dense<0.000000e+00> : vector<8xf32>
    %115 = vector.multi_reduction <add>, %114, %cst_40 [1] : vector<8x32xf32> to vector<8xf32>
    %116 = vector.shape_cast %115 : vector<8xf32> to vector<8x1xf32>
    %cst_41 = arith.constant 3.200000e+01 : f32
    %117 = vector.broadcast %cst_41 : f32 to vector<8x1xf32>
    %118 = arith.divf %116, %117 : vector<8x1xf32>
    %119 = vector.broadcast %111 : vector<8x1xf32> to vector<8x32xf32>
    %120 = arith.subf %105, %119 : vector<8x32xf32>
    %cst_42 = arith.constant 9.99999974E-6 : f32
    %121 = vector.broadcast %cst_42 : f32 to vector<8x1xf32>
    %122 = arith.addf %118, %121 : vector<8x1xf32>
    %123 = math.rsqrt %122 : vector<8x1xf32>
    %124 = vector.broadcast %123 : vector<8x1xf32> to vector<8x32xf32>
    %125 = arith.mulf %120, %124 : vector<8x32xf32>
    %126 = vector.broadcast %106 : vector<1x32xf32> to vector<8x32xf32>
    %127 = arith.mulf %125, %126 : vector<8x32xf32>
    %128 = vector.broadcast %107 : vector<1x32xf32> to vector<8x32xf32>
    %129 = arith.addf %127, %128 : vector<8x32xf32>
    %130 = arith.truncf %129 : vector<8x32xf32> to vector<8x32xbf16>
    %c0_43 = arith.constant 0 : index
    %c0_44 = arith.constant 0 : index
    %131 = vector.load %arg9[%c0_43, %c0_44] : memref<32x64xbf16, #tpu.memory_space<vmem>>, vector<32x64xbf16>
    %cst_45 = arith.constant dense<0.000000e+00> : vector<8x64xf32>
    %132 = tpu.matmul %130, %131, %cst_45 {dimension_numbers = #tpu.dot_dimension_numbers<[1], [0], [0], [1], [0, 0, 1, 1], [], []>} : vector<8x32xbf16>, vector<32x64xbf16>, vector<8x64xf32> -> vector<8x64xf32>
    %c0_46 = arith.constant 0 : index
    %c0_47 = arith.constant 0 : index
    %133 = vector.load %arg10[%c0_46, %c0_47] : memref<1x64xf32, #tpu.memory_space<vmem>>, vector<1x64xf32>
    %134 = vector.broadcast %133 : vector<1x64xf32> to vector<8x64xf32>
    %135 = arith.addf %132, %134 : vector<8x64xf32>
    %136 = arith.mulf %135, %135 : vector<8x64xf32>
    %137 = arith.mulf %135, %136 : vector<8x64xf32>
    %cst_48 = arith.constant 4.471500e-02 : f32
    %138 = vector.broadcast %cst_48 : f32 to vector<8x64xf32>
    %139 = arith.mulf %138, %137 : vector<8x64xf32>
    %140 = arith.addf %135, %139 : vector<8x64xf32>
    %cst_49 = arith.constant 0.797884583 : f32
    %141 = vector.broadcast %cst_49 : f32 to vector<8x64xf32>
    %142 = arith.mulf %141, %140 : vector<8x64xf32>
    %143 = math.tanh %142 : vector<8x64xf32>
    %cst_50 = arith.constant 1.000000e+00 : f32
    %144 = vector.broadcast %cst_50 : f32 to vector<8x64xf32>
    %145 = arith.addf %144, %143 : vector<8x64xf32>
    %cst_51 = arith.constant 5.000000e-01 : f32
    %146 = vector.broadcast %cst_51 : f32 to vector<8x64xf32>
    %147 = arith.mulf %146, %145 : vector<8x64xf32>
    %148 = arith.mulf %135, %147 : vector<8x64xf32>
    %149 = arith.truncf %148 : vector<8x64xf32> to vector<8x64xbf16>
    %c0_52 = arith.constant 0 : index
    %c0_53 = arith.constant 0 : index
    %150 = vector.load %arg11[%c0_52, %c0_53] : memref<64x32xbf16, #tpu.memory_space<vmem>>, vector<64x32xbf16>
    %cst_54 = arith.constant dense<0.000000e+00> : vector<8x32xf32>
    %151 = tpu.matmul %149, %150, %cst_54 {dimension_numbers = #tpu.dot_dimension_numbers<[1], [0], [0], [1], [0, 0, 1, 1], [], []>} : vector<8x64xbf16>, vector<64x32xbf16>, vector<8x32xf32> -> vector<8x32xf32>
    %c0_55 = arith.constant 0 : index
    %c0_56 = arith.constant 0 : index
    %152 = vector.load %arg12[%c0_55, %c0_56] : memref<1x32xf32, #tpu.memory_space<vmem>>, vector<1x32xf32>
    %153 = vector.broadcast %152 : vector<1x32xf32> to vector<8x32xf32>
    %154 = arith.addf %151, %153 : vector<8x32xf32>
    %155 = arith.addf %154, %129 : vector<8x32xf32>
    %c0_57 = arith.constant 0 : index
    %c0_58 = arith.constant 0 : index
    %156 = vector.load %arg13[%c0_57, %c0_58] : memref<1x32xf32, #tpu.memory_space<vmem>>, vector<1x32xf32>
    %c0_59 = arith.constant 0 : index
    %c0_60 = arith.constant 0 : index
    %157 = vector.load %arg14[%c0_59, %c0_60] : memref<1x32xf32, #tpu.memory_space<vmem>>, vector<1x32xf32>
    %cst_61 = arith.constant dense<0.000000e+00> : vector<8xf32>
    %158 = vector.multi_reduction <add>, %155, %cst_61 [1] : vector<8x32xf32> to vector<8xf32>
    %159 = vector.shape_cast %158 : vector<8xf32> to vector<8x1xf32>
    %cst_62 = arith.constant 3.200000e+01 : f32
    %160 = vector.broadcast %cst_62 : f32 to vector<8x1xf32>
    %161 = arith.divf %159, %160 : vector<8x1xf32>
    %162 = vector.broadcast %161 : vector<8x1xf32> to vector<8x32xf32>
    %163 = arith.subf %155, %162 : vector<8x32xf32>
    %164 = arith.mulf %163, %163 : vector<8x32xf32>
    %cst_63 = arith.constant dense<0.000000e+00> : vector<8xf32>
    %165 = vector.multi_reduction <add>, %164, %cst_63 [1] : vector<8x32xf32> to vector<8xf32>
    %166 = vector.shape_cast %165 : vector<8xf32> to vector<8x1xf32>
    %cst_64 = arith.constant 3.200000e+01 : f32
    %167 = vector.broadcast %cst_64 : f32 to vector<8x1xf32>
    %168 = arith.divf %166, %167 : vector<8x1xf32>
    %169 = vector.broadcast %161 : vector<8x1xf32> to vector<8x32xf32>
    %170 = arith.subf %155, %169 : vector<8x32xf32>
    %cst_65 = arith.constant 9.99999974E-6 : f32
    %171 = vector.broadcast %cst_65 : f32 to vector<8x1xf32>
    %172 = arith.addf %168, %171 : vector<8x1xf32>
    %173 = math.rsqrt %172 : vector<8x1xf32>
    %174 = vector.broadcast %173 : vector<8x1xf32> to vector<8x32xf32>
    %175 = arith.mulf %170, %174 : vector<8x32xf32>
    %176 = vector.broadcast %156 : vector<1x32xf32> to vector<8x32xf32>
    %177 = arith.mulf %175, %176 : vector<8x32xf32>
    %178 = vector.broadcast %157 : vector<1x32xf32> to vector<8x32xf32>
    %179 = arith.addf %177, %178 : vector<8x32xf32>
    %180 = vector.shape_cast %179 : vector<8x32xf32> to vector<1x8x32xf32>
    %c0_66 = arith.constant 0 : index
    %c0_67 = arith.constant 0 : index
    %c0_68 = arith.constant 0 : index
    %181 = vector.load %arg15[%c0_66, %c0_67, %c0_68] : memref<1x8x32xf32, #tpu.memory_space<vmem>>, vector<1x8x32xf32>
    tpu.vector_store %arg15[%c0_66, %c0_67, %c0_68], %180 {strides = array<i32>} : memref<1x8x32xf32, #tpu.memory_space<vmem>>, vector<1x8x32xf32>,
    return
  }
  func.func @transform_0(%arg0: i32) -> (i32, i32, i32) {
    %c0_i32 = arith.constant 0 : i32
    %c0_i32_0 = arith.constant 0 : i32
    %c0_i32_1 = arith.constant 0 : i32
    return %arg0, %c0_i32, %c0_i32_0 : i32, i32, i32
  }
  func.func @transform_1(%arg0: i32) -> (i32, i32, i32) {
    %c0_i32 = arith.constant 0 : i32
    %c0_i32_0 = arith.constant 0 : i32
    %c0_i32_1 = arith.constant 0 : i32
    return %arg0, %c0_i32, %c0_i32_0 : i32, i32, i32
  }
  func.func @transform_2(%arg0: i32) -> (i32, i32) {
    %c0_i32 = arith.constant 0 : i32
    %c0_i32_0 = arith.constant 0 : i32
    %c0_i32_1 = arith.constant 0 : i32
    return %c0_i32, %c0_i32_0 : i32, i32
  }
  func.func @transform_3(%arg0: i32) -> (i32, i32) {
    %c0_i32 = arith.constant 0 : i32
    %c0_i32_0 = arith.constant 0 : i32
    %c0_i32_1 = arith.constant 0 : i32
    return %c0_i32, %c0_i32_0 : i32, i32
  }
  func.func @transform_4(%arg0: i32) -> (i32, i32) {
    %c0_i32 = arith.constant 0 : i32
    %c0_i32_0 = arith.constant 0 : i32
    %c0_i32_1 = arith.constant 0 : i32
    return %c0_i32, %c0_i32_0 : i32, i32
  }
  func.func @transform_5(%arg0: i32) -> (i32, i32) {
    %c0_i32 = arith.constant 0 : i32
    %c0_i32_0 = arith.constant 0 : i32
    %c0_i32_1 = arith.constant 0 : i32
    return %c0_i32, %c0_i32_0 : i32, i32
  }
  func.func @transform_6(%arg0: i32) -> (i32, i32) {
    %c0_i32 = arith.constant 0 : i32
    %c0_i32_0 = arith.constant 0 : i32
    %c0_i32_1 = arith.constant 0 : i32
    return %c0_i32, %c0_i32_0 : i32, i32
  }
  func.func @transform_7(%arg0: i32) -> (i32, i32) {
    %c0_i32 = arith.constant 0 : i32
    %c0_i32_0 = arith.constant 0 : i32
    %c0_i32_1 = arith.constant 0 : i32
    return %c0_i32, %c0_i32_0 : i32, i32
  }
  func.func @transform_8(%arg0: i32) -> (i32, i32) {
    %c0_i32 = arith.constant 0 : i32
    %c0_i32_0 = arith.constant 0 : i32
    %c0_i32_1 = arith.constant 0 : i32
    return %c0_i32, %c0_i32_0 : i32, i32
  }
  func.func @transform_9(%arg0: i32) -> (i32, i32) {
    %c0_i32 = arith.constant 0 : i32
    %c0_i32_0 = arith.constant 0 : i32
    %c0_i32_1 = arith.constant 0 : i32
    return %c0_i32, %c0_i32_0 : i32, i32
  }
  func.func @transform_10(%arg0: i32) -> (i32, i32) {
    %c0_i32 = arith.constant 0 : i32
    %c0_i32_0 = arith.constant 0 : i32
    %c0_i32_1 = arith.constant 0 : i32
    return %c0_i32, %c0_i32_0 : i32, i32
  }
  func.func @transform_11(%arg0: i32) -> (i32, i32) {
    %c0_i32 = arith.constant 0 : i32
    %c0_i32_0 = arith.constant 0 : i32
    %c0_i32_1 = arith.constant 0 : i32
    return %c0_i32, %c0_i32_0 : i32, i32
  }
  func.func @transform_12(%arg0: i32) -> (i32, i32) {
    %c0_i32 = arith.constant 0 : i32
    %c0_i32_0 = arith.constant 0 : i32
    %c0_i32_1 = arith.constant 0 : i32
    return %c0_i32, %c0_i32_0 : i32, i32
  }
  func.func @transform_13(%arg0: i32) -> (i32, i32) {
    %c0_i32 = arith.constant 0 : i32
    %c0_i32_0 = arith.constant 0 : i32
    %c0_i32_1 = arith.constant 0 : i32
    return %c0_i32, %c0_i32_0 : i32, i32
  }
  func.func @transform_14(%arg0: i32) -> (i32, i32, i32) {
    %c0_i32 = arith.constant 0 : i32
    %c0_i32_0 = arith.constant 0 : i32
    %c0_i32_1 = arith.constant 0 : i32
    return %arg0, %c0_i32, %c0_i32_0 : i32, i32, i32
  }
}

</mosaic_0001>

<llo_original>
// kernel: _lambda_.7
$region0: #{_lambda_.7}
  #allocation0 [shape = 'u32[]', space=smem, size = 0x4, offset = 0x4, fixed_abs, tag = 'smem constant byte address 0x4 - core index']
  #allocation1 [shape = 'u32[72,128]{1,0:T(1,128)}', space=vmem, size = 0x9000, scoped, tag = 'internal scratch']
  %s0 = inlined_call_operand.vmem [shape: f32[16,32], index: 0, kind: input, shape index: {}]
  %s1 = inlined_call_operand.vmem [shape: f32[32,32], index: 1, kind: input, shape index: {}]
  %s2 = inlined_call_operand.vmem [shape: f32[1,32], index: 2, kind: input, shape index: {}]
  %s3 = inlined_call_operand.vmem [shape: f32[32,2], index: 3, kind: input, shape index: {}]
  %s4 = inlined_call_operand.vmem [shape: f32[1,2], index: 4, kind: input, shape index: {}]
  %s5 = inlined_call_operand.vmem [shape: f32[16,2], index: 5, kind: output, shape index: {}]
  %s6 = sld [smem:[#allocation0]]
  $region30: #{_lambda_.7} parent=0
    _
  %s8 = ssub.s32 1, %s6
  %s9 = scalar_select 0, %s8, %s6
  // Predicated region
  $region2: #{_lambda_.7} parent=0 // pred_check
    _
  $region3: #{_lambda_.7} parent=0 // pred_check_branch
    %11 = sbr.rel (0) target = $region5
  $region4: #{_lambda_.7} parent=0 // pred_region
    _
  $region5: #{_lambda_.7} parent=0 // pred_fallthru
    _
  // Predicated region
  $region6: #{_lambda_.7} parent=0 // pred_check
    _
  $region7: #{_lambda_.7} parent=0 // pred_check_branch
    %13 = sbr.rel (0) target = $region9
  $region8: #{_lambda_.7} parent=0 // pred_region
    _
  $region9: #{_lambda_.7} parent=0 // pred_fallthru
    _
  // Predicated region
  $region10: #{_lambda_.7} parent=0 // pred_check
    _
  $region11: #{_lambda_.7} parent=0 // pred_check_branch
    %15 = sbr.rel (0) target = $region13
  $region12: #{_lambda_.7} parent=0 // pred_region
    _
  $region13: #{_lambda_.7} parent=0 // pred_fallthru
    _
  // Predicated region
  $region14: #{_lambda_.7} parent=0 // pred_check
    _
  $region15: #{_lambda_.7} parent=0 // pred_check_branch
    %17 = sbr.rel (0) target = $region17
  $region16: #{_lambda_.7} parent=0 // pred_region
    _
  $region17: #{_lambda_.7} parent=0 // pred_fallthru
    _
  // Predicated region
  $region18: #{_lambda_.7} parent=0 // pred_check
    _
  $region19: #{_lambda_.7} parent=0 // pred_check_branch
    %19 = sbr.rel (0) target = $region21
  $region20: #{_lambda_.7} parent=0 // pred_region
    _
  $region21: #{_lambda_.7} parent=0 // pred_fallthru
    _
  %v20 = vld [vmem:[%s0] sm:$0xff]
  %v21 = vld [vmem:[%s0 + $0x8] sm:$0xff]
  %v22 = vld [vmem:[%s1] sm:$0xff]
  %v23 = vld [vmem:[%s1 + $0x8] sm:$0xff]
  %v24 = vld [vmem:[%s1 + $0x10] sm:$0xff]
  %v25 = vld [vmem:[%s1 + $0x18] sm:$0xff]
  %v26 = vld [vmem:[%s2] sm:$0x1]
  %v28 = vperm.slane %v26, 0
  %vm30 = vcmask 261120
  %v32 = vsel %vm30, %v20, 0
  %v35 = vsel %vm30, %v21, 0
  %37 = vmatpush.msra.mxu0 0.0
  %38 = vmatpush.msra.mxu0 0.0
  %39 = vmatpush.msra.mxu0 0.0
  %40 = vmatpush.msra.mxu0 0.0
  %41 = vmatpush.msra.mxu0 0.0
  %42 = vmatpush.msra.mxu0 0.0
  %43 = vmatpush.msra.mxu0 0.0
  %44 = vmatpush.msra.mxu0 0.0
  %45 = vmatpush.msra.mxu0 0.0
  %46 = vmatpush.msra.mxu0 0.0
  %47 = vmatpush.msra.mxu0 0.0
  %48 = vmatpush.msra.mxu0 0.0
  %49 = vmatpush.msra.mxu0 %v25
  %50 = vmatpush.msra.mxu0 %v24
  %51 = vmatpush.msra.mxu0 %v23
  %52 = vmatpush.msra.mxu0 %v22
  %53 = vmatmul.f32.gmra.mxu0 %v32
  %v54 = vpop.f32.mrf.mxu0
  %v55 = vadd.f32 %v28, %v54
  %56 = vmatmul.f32.gmra.mxu0 %v35
  %v57 = vpop.f32.mrf.mxu0
  %v58 = vadd.f32 %v28, %v57
  %59 = vdwg.mxu0
  %v60 = vtanh.pop %v55
  %v61 = vtanh.pop %v58
  %v62 = vld [vmem:[%s3] sm:$0xff]
  %v63 = vld [vmem:[%s3 + $0x8] sm:$0xff]
  %v64 = vld [vmem:[%s3 + $0x10] sm:$0xff]
  %v65 = vld [vmem:[%s3 + $0x18] sm:$0xff]
  %v66 = vld [vmem:[%s4] sm:$0x1]
  %v68 = vperm.slane %v66, 0
  %v71 = vsel %vm30, %v60, 0
  %v74 = vsel %vm30, %v61, 0
  %76 = vmatpush.msra.mxu0 0.0
  %77 = vmatpush.msra.mxu0 0.0
  %78 = vmatpush.msra.mxu0 0.0
  %79 = vmatpush.msra.mxu0 0.0
  %80 = vmatpush.msra.mxu0 0.0
  %81 = vmatpush.msra.mxu0 0.0
  %82 = vmatpush.msra.mxu0 0.0
  %83 = vmatpush.msra.mxu0 0.0
  %84 = vmatpush.msra.mxu0 0.0
  %85 = vmatpush.msra.mxu0 0.0
  %86 = vmatpush.msra.mxu0 0.0
  %87 = vmatpush.msra.mxu0 0.0
  %88 = vmatpush.msra.mxu0 %v65
  %89 = vmatpush.msra.mxu0 %v64
  %90 = vmatpush.msra.mxu0 %v63
  %91 = vmatpush.msra.mxu0 %v62
  %92 = vmatmul.f32.gmra.mxu0 %v71
  %v93 = vpop.f32.mrf.mxu0
  %v94 = vadd.f32 %v68, %v93
  %95 = vmatmul.f32.gmra.mxu0 %v74
  %v96 = vpop.f32.mrf.mxu0
  %v97 = vadd.f32 %v68, %v96
  %98 = vdwg.mxu0
  %vm99 = vcmask 15360
  %v100 = vsel %vm99, %v94, -inf
  %101 = vmax.xlane.f32.xlu0 %v100
  %v102 = vpop.xlane.xlu0 %101
  %v103 = vsel %vm99, %v97, -inf
  %104 = vmax.xlane.f32.xlu0 %v103
  %v105 = vpop.xlane.xlu0 %104
  %v106 = vsub.f32 %v94, %v102
  %v107 = vsub.f32 %v97, %v105
  %v108 = vmul.f32 %v106, 1.442695
  %v109 = vpow.pop %v108
  %v110 = vmul.f32 %v107, 1.442695
  %v111 = vpow.pop %v110
  %v112 = vsel %vm99, %v109, 0.0
  %113 = vadd.xlane.f32.xlu0 %v112
  %v114 = vpop.xlane.xlu0 %113
  %v115 = vsel %vm99, %v111, 0.0
  %116 = vadd.xlane.f32.xlu0 %v115
  %v117 = vpop.xlane.xlu0 %116
  %v118 = vrcp.pop %v114
  %v119 = vrcp.pop %v117
  %v120 = vmul.f32 %v109, %v118
  %v121 = vmul.f32 %v111, %v119
  %122 = vst.msk [vmem:[%s5] sm:$0xff] %vm99, %v120
  %123 = vst.msk [vmem:[%s5 + $0x8] sm:$0xff] %vm99, %v121
  // Predicated region
  $region22: #{_lambda_.7} parent=0 // pred_check
    _
  $region23: #{_lambda_.7} parent=0 // pred_check_branch
    %125 = sbr.rel (0) target = $region25
  $region24: #{_lambda_.7} parent=0 // pred_region
    _
  $region25: #{_lambda_.7} parent=0 // pred_fallthru
    _
  // Predicated region
  $region26: #{_lambda_.7} parent=0 // pred_check
    _
  $region27: #{_lambda_.7} parent=0 // pred_check_branch
    %127 = sbr.rel (0) target = $region29
  $region28: #{_lambda_.7} parent=0 // pred_region
    _
  $region29: #{_lambda_.7} parent=0 // pred_fallthru
    _

// kernel: _lambda_.4
$region0: #{_lambda_.4}
  #allocation0 [shape = 'u32[]', space=smem, size = 0x4, offset = 0x4, fixed_abs, tag = 'smem constant byte address 0x4 - core index']
  #allocation1 [shape = 'u32[72,128]{1,0:T(1,128)}', space=vmem, size = 0x9000, scoped, tag = 'internal scratch']
  %s0 = inlined_call_operand.vmem [shape: f32[2,8,8], index: 0, kind: input, shape index: {}]
  %s1 = inlined_call_operand.vmem [shape: f32[2,8,1], index: 1, kind: input, shape index: {}]
  %s2 = inlined_call_operand.vmem [shape: f32[2,8,32], index: 2, kind: input, shape index: {}]
  %s3 = inlined_call_operand.vmem [shape: f32[2,8,32], index: 3, kind: input, shape index: {}]
  %s4 = inlined_call_operand.vmem [shape: f32[1,32], index: 4, kind: input, shape index: {}]
  %s5 = inlined_call_operand.vmem [shape: f32[1,32], index: 5, kind: input, shape index: {}]
  %s6 = inlined_call_operand.vmem [shape: f32[2,8,32], index: 6, kind: output, shape index: {}]
  %s7 = sld [smem:[#allocation0]]
  $region57: #{_lambda_.4} parent=0
    _
  %s9 = ssub.s32 1, %s7
  %s10 = scalar_select 0, %s9, %s7
  loop: start=0, step=1, limit=4
  $region2: #{_lambda_.4} parent=0 // loop_pre_header
    _
  $region3: #{_lambda_.4} parent=0 // loop_header
    %s12 = sphi 0, %s16
    %p13 = scmp.ge.s32.totalorder %s12, 4
    %s22 = sphi 0, %s24
    %s25 = sphi 0, %s22
    %s26 = sphi 0, %s25
    %s42 = sphi 0, %s26
    %s48 = sphi 0, %s50
    %s51 = sphi 0, %s48
    %s52 = sphi 0, %s51
    %s68 = sphi 0, %s52
    %s74 = sphi 0, %s76
    %s77 = sphi 0, %s74
    %s78 = sphi 0, %s77
    %s94 = sphi 0, %s78
    %s100 = sphi 0, %s102
    %s103 = sphi 0, %s100
    %s104 = sphi 0, %s103
    %s120 = sphi 0, %s104
    %s124 = sphi 0, %s124
    %s126 = sphi 0, %s124
    %s127 = sphi 0, %s126
    %s141 = sphi 0, %s127
    %s145 = sphi 0, %s145
    %s147 = sphi 0, %s145
    %s148 = sphi 0, %s147
    %s162 = sphi 0, %s148
    %s168 = sphi 0, %s170
    %s171 = sphi 0, %s168
    %s172 = sphi 0, %s171
    %s188 = sphi 0, %s172
  $region4: #{_lambda_.4} parent=0 // loop_header_branch
    %15 = sbr.rel (%p13) target = $region8
  $region5: #{_lambda_.4} parent=0 // loop_body
    %s17 = ssub.s32 %s12, 1
    %s18 = ssub.s32 %s12, 2
    %s19 = sadd.s32 %s12, 1
    %s20 = ssub.s32 %s12, %s19
    %p21 = scmp.eq.s32.totalorder %s20, 0
    %s23 = sadd.s32 %s22, 1
    %s24 = scalar_select %p21, %s22, %s23
    %p27 = pneg %p21
    %p28 = scmp.eq.s32.totalorder %s12, 1
    %p29 = por %p27, %p28
    %p30 = scmp.ne.s32.totalorder %s22, %s25
    %p31 = scmp.eq.s32.totalorder %s12, 0
    %p32 = por %p30, %p31
    %p33 = scmp.ne.s32.totalorder %s22, %s25
    %p34 = scmp.eq.s32.totalorder %s17, 1
    %p35 = por %p33, %p34
    %p36 = scmp.ne.s32.totalorder %s25, %s26
    %p37 = scmp.eq.s32.totalorder %s17, 0
    %p38 = por %p36, %p37
    %p39 = scmp.ne.s32.totalorder %s25, %s26
    %p40 = scmp.eq.s32.totalorder %s18, 1
    %p41 = por %p39, %p40
    %p43 = scmp.ne.s32.totalorder %s26, %s42
    %p44 = scmp.eq.s32.totalorder %s18, 0
    %p45 = por %p43, %p44
    %s46 = ssub.s32 %s12, %s19
    %p47 = scmp.eq.s32.totalorder %s46, 0
    %s49 = sadd.s32 %s48, 1
    %s50 = scalar_select %p47, %s48, %s49
    %p53 = pneg %p47
    %p54 = scmp.eq.s32.totalorder %s12, 1
    %p55 = por %p53, %p54
    %p56 = scmp.ne.s32.totalorder %s48, %s51
    %p57 = scmp.eq.s32.totalorder %s12, 0
    %p58 = por %p56, %p57
    %p59 = scmp.ne.s32.totalorder %s48, %s51
    %p60 = scmp.eq.s32.totalorder %s17, 1
    %p61 = por %p59, %p60
    %p62 = scmp.ne.s32.totalorder %s51, %s52
    %p63 = scmp.eq.s32.totalorder %s17, 0
    %p64 = por %p62, %p63
    %p65 = scmp.ne.s32.totalorder %s51, %s52
    %p66 = scmp.eq.s32.totalorder %s18, 1
    %p67 = por %p65, %p66
    %p69 = scmp.ne.s32.totalorder %s52, %s68
    %p70 = scmp.eq.s32.totalorder %s18, 0
    %p71 = por %p69, %p70
    %s72 = ssub.s32 %s12, %s19
    %p73 = scmp.eq.s32.totalorder %s72, 0
    %s75 = sadd.s32 %s74, 1
    %s76 = scalar_select %p73, %s74, %s75
    %p79 = pneg %p73
    %p80 = scmp.eq.s32.totalorder %s12, 1
    %p81 = por %p79, %p80
    %p82 = scmp.ne.s32.totalorder %s74, %s77
    %p83 = scmp.eq.s32.totalorder %s12, 0
    %p84 = por %p82, %p83
    %p85 = scmp.ne.s32.totalorder %s74, %s77
    %p86 = scmp.eq.s32.totalorder %s17, 1
    %p87 = por %p85, %p86
    %p88 = scmp.ne.s32.totalorder %s77, %s78
    %p89 = scmp.eq.s32.totalorder %s17, 0
    %p90 = por %p88, %p89
    %p91 = scmp.ne.s32.totalorder %s77, %s78
    %p92 = scmp.eq.s32.totalorder %s18, 1
    %p93 = por %p91, %p92
    %p95 = scmp.ne.s32.totalorder %s78, %s94
    %p96 = scmp.eq.s32.totalorder %s18, 0
    %p97 = por %p95, %p96
    %s98 = ssub.s32 %s12, %s19
    %p99 = scmp.eq.s32.totalorder %s98, 0
    %s101 = sadd.s32 %s100, 1
    %s102 = scalar_select %p99, %s100, %s101
    %p105 = pneg %p99
    %p106 = scmp.eq.s32.totalorder %s12, 1
    %p107 = por %p105, %p106
    %p108 = scmp.ne.s32.totalorder %s100, %s103
    %p109 = scmp.eq.s32.totalorder %s12, 0
    %p110 = por %p108, %p109
    %p111 = scmp.ne.s32.totalorder %s100, %s103
    %p112 = scmp.eq.s32.totalorder %s17, 1
    %p113 = por %p111, %p112
    %p114 = scmp.ne.s32.totalorder %s103, %s104
    %p115 = scmp.eq.s32.totalorder %s17, 0
    %p116 = por %p114, %p115
    %p117 = scmp.ne.s32.totalorder %s103, %s104
    %p118 = scmp.eq.s32.totalorder %s18, 1
    %p119 = por %p117, %p118
    %p121 = scmp.ne.s32.totalorder %s104, %s120
    %p122 = scmp.eq.s32.totalorder %s18, 0
    %p123 = por %p121, %p122
    %s125 = sadd.s32 %s124, 1
    %p128 = scmp.eq.s32.totalorder %s12, 1
    %p129 = scmp.ne.s32.totalorder %s124, %s126
    %p130 = scmp.eq.s32.totalorder %s12, 0
    %p131 = por %p129, %p130
    %p132 = scmp.ne.s32.totalorder %s124, %s126
    %p133 = scmp.eq.s32.totalorder %s17, 1
    %p134 = por %p132, %p133
    %p135 = scmp.ne.s32.totalorder %s126, %s127
    %p136 = scmp.eq.s32.totalorder %s17, 0
    %p137 = por %p135, %p136
    %p138 = scmp.ne.s32.totalorder %s126, %s127
    %p139 = scmp.eq.s32.totalorder %s18, 1
    %p140 = por %p138, %p139
    %p142 = scmp.ne.s32.totalorder %s127, %s141
    %p143 = scmp.eq.s32.totalorder %s18, 0
    %p144 = por %p142, %p143
    %s146 = sadd.s32 %s145, 1
    %p149 = scmp.eq.s32.totalorder %s12, 1
    %p150 = scmp.ne.s32.totalorder %s145, %s147
    %p151 = scmp.eq.s32.totalorder %s12, 0
    %p152 = por %p150, %p151
    %p153 = scmp.ne.s32.totalorder %s145, %s147
    %p154 = scmp.eq.s32.totalorder %s17, 1
    %p155 = por %p153, %p154
    %p156 = scmp.ne.s32.totalorder %s147, %s148
    %p157 = scmp.eq.s32.totalorder %s17, 0
    %p158 = por %p156, %p157
    %p159 = scmp.ne.s32.totalorder %s147, %s148
    %p160 = scmp.eq.s32.totalorder %s18, 1
    %p161 = por %p159, %p160
    %p163 = scmp.ne.s32.totalorder %s148, %s162
    %p164 = scmp.eq.s32.totalorder %s18, 0
    %p165 = por %p163, %p164
    %s166 = ssub.s32 %s12, %s19
    %p167 = scmp.eq.s32.totalorder %s166, 0
    %s169 = sadd.s32 %s168, 1
    %s170 = scalar_select %p167, %s168, %s169
    %p173 = pneg %p167
    %p174 = scmp.eq.s32.totalorder %s12, 1
    %p175 = por %p173, %p174
    %p176 = scmp.ne.s32.totalorder %s168, %s171
    %p177 = scmp.eq.s32.totalorder %s12, 0
    %p178 = por %p176, %p177
    %p179 = scmp.ne.s32.totalorder %s168, %s171
    %p180 = scmp.eq.s32.totalorder %s17, 1
    %p181 = por %p179, %p180
    %p182 = scmp.ne.s32.totalorder %s171, %s172
    %p183 = scmp.eq.s32.totalorder %s17, 0
    %p184 = por %p182, %p183
    %p185 = scmp.ne.s32.totalorder %s171, %s172
    %p186 = scmp.eq.s32.totalorder %s18, 1
    %p187 = por %p185, %p186
    %p189 = scmp.ne.s32.totalorder %s172, %s188
    %p190 = scmp.eq.s32.totalorder %s18, 0
    %p191 = por %p189, %p190
    %p192 = scmp.le.s32.totalorder 1, %s12
    %p193 = scmp.lt.s32.totalorder %s12, 3
    %p194 = pnand %p192, %p193
    %p195 = pneg %p194
    // Predicated region
    $region9: #{_lambda_.4} parent=5 // pred_check
      _
    $region10: #{_lambda_.4} parent=5 // pred_check_branch
      %197 = sbr.rel (%p194) target = $region12
    $region11: #{_lambda_.4} parent=5 // pred_region
      %s198 = ssub.s32 %s12, 1
      // Predicated region
      $region13: #{_lambda_.4} parent=11 // pred_check
        %p199 = pneg %p137
      $region14: #{_lambda_.4} parent=11 // pred_check_branch
        %201 = sbr.rel (%p199) target = $region16
      $region15: #{_lambda_.4} parent=11 // pred_region
        _
      $region16: #{_lambda_.4} parent=11 // pred_fallthru
        _
      // Predicated region
      $region17: #{_lambda_.4} parent=11 // pred_check
        %p202 = pneg %p158
      $region18: #{_lambda_.4} parent=11 // pred_check_branch
        %204 = sbr.rel (%p202) target = $region20
      $region19: #{_lambda_.4} parent=11 // pred_region
        _
      $region20: #{_lambda_.4} parent=11 // pred_fallthru
        _
    $region12: #{_lambda_.4} parent=5 // pred_fallthru
      _
    %p205 = scmp.lt.s32.totalorder %s12, 2
    // Predicated region
    $region21: #{_lambda_.4} parent=5 // pred_check
      %p206 = pneg %p205
    $region22: #{_lambda_.4} parent=5 // pred_check_branch
      %208 = sbr.rel (%p206) target = $region24
    $region23: #{_lambda_.4} parent=5 // pred_region
      // Predicated region
      $region25: #{_lambda_.4} parent=23 // pred_check
        %p209 = pneg %p32
      $region26: #{_lambda_.4} parent=23 // pred_check_branch
        %211 = sbr.rel (%p209) target = $region28
      $region27: #{_lambda_.4} parent=23 // pred_region
        %p212 = scmp.lt.s32.totalorder %s12, 1
        %s213 = scalar_select %p212, %s12, 1
        %s214 = smul.addr %s213, 8
        %s215 = scalar_lea.vmem %s0, %s214
      $region28: #{_lambda_.4} parent=23 // pred_fallthru
        _
      // Predicated region
      $region29: #{_lambda_.4} parent=23 // pred_check
        %p216 = pneg %p58
      $region30: #{_lambda_.4} parent=23 // pred_check_branch
        %218 = sbr.rel (%p216) target = $region32
      $region31: #{_lambda_.4} parent=23 // pred_region
        %p219 = scmp.lt.s32.totalorder %s12, 1
        %s220 = scalar_select %p219, %s12, 1
        %s221 = smul.addr %s220, 8
        %s222 = scalar_lea.vmem %s1, %s221
      $region32: #{_lambda_.4} parent=23 // pred_fallthru
        _
      // Predicated region
      $region33: #{_lambda_.4} parent=23 // pred_check
        %p223 = pneg %p84
      $region34: #{_lambda_.4} parent=23 // pred_check_branch
        %225 = sbr.rel (%p223) target = $region36
      $region35: #{_lambda_.4} parent=23 // pred_region
        %p226 = scmp.lt.s32.totalorder %s12, 1
        %s227 = scalar_select %p226, %s12, 1
        %s228 = smul.addr %s227, 8
        %s229 = scalar_lea.vmem %s2, %s228
      $region36: #{_lambda_.4} parent=23 // pred_fallthru
        _
      // Predicated region
      $region37: #{_lambda_.4} parent=23 // pred_check
        %p230 = pneg %p110
      $region38: #{_lambda_.4} parent=23 // pred_check_branch
        %232 = sbr.rel (%p230) target = $region40
      $region39: #{_lambda_.4} parent=23 // pred_region
        %p233 = scmp.lt.s32.totalorder %s12, 1
        %s234 = scalar_select %p233, %s12, 1
        %s235 = smul.addr %s234, 8
        %s236 = scalar_lea.vmem %s3, %s235
      $region40: #{_lambda_.4} parent=23 // pred_fallthru
        _
    $region24: #{_lambda_.4} parent=5 // pred_fallthru
      _
    %p237 = scmp.le.s32.totalorder 1, %s12
    %p238 = scmp.lt.s32.totalorder %s12, 3
    %p239 = pnand %p237, %p238
    %p240 = pneg %p239
    // Predicated region
    $region41: #{_lambda_.4} parent=5 // pred_check
      _
    $region42: #{_lambda_.4} parent=5 // pred_check_branch
      %242 = sbr.rel (%p239) target = $region44
    $region43: #{_lambda_.4} parent=5 // pred_region
      %s243 = ssub.s32 %s12, 1
      %p244 = scmp.lt.s32.totalorder %s17, 1
      %s245 = scalar_select %p244, %s17, 1
      %s246 = smul.addr %s245, 8
      %s247 = scalar_lea.vmem %s0, %s246
      %p248 = pneg %p38
      %p249 = pneg %p35
      %p250 = scmp.lt.s32.totalorder %s17, 1
      %s251 = scalar_select %p250, %s17, 1
      %s252 = smul.addr %s251, 8
      %s253 = scalar_lea.vmem %s1, %s252
      %p254 = pneg %p64
      %p255 = pneg %p61
      %p256 = scmp.lt.s32.totalorder %s17, 1
      %s257 = scalar_select %p256, %s17, 1
      %s258 = smul.addr %s257, 8
      %s259 = scalar_lea.vmem %s2, %s258
      %p260 = pneg %p90
      %p261 = pneg %p87
      %p262 = scmp.lt.s32.totalorder %s17, 1
      %s263 = scalar_select %p262, %s17, 1
      %s264 = smul.addr %s263, 8
      %s265 = scalar_lea.vmem %s3, %s264
      %p266 = pneg %p116
      %p267 = pneg %p113
      %p268 = pneg %p137
      %p269 = pneg %p134
      %p270 = pneg %p158
      %p271 = pneg %p155
      %p272 = pneg %p184
      %p273 = pneg %p181
      %p274 = scmp.lt.s32.totalorder %s17, 1
      %s275 = scalar_select %p274, %s17, 1
      %s276 = smul.addr %s275, 8
      %s277 = scalar_lea.vmem %s6, %s276
      %p278 = scmp.lt.s32.totalorder %s17, 1
      %s279 = scalar_select %p278, %s17, 1
      %s280 = smul.addr %s279, 8
      %s281 = scalar_lea.vmem %s0, %s280
      %p282 = scmp.lt.s32.totalorder %s17, 1
      %s283 = scalar_select %p282, %s17, 1
      %s284 = smul.addr %s283, 8
      %s285 = scalar_lea.vmem %s1, %s284
      %p286 = scmp.lt.s32.totalorder %s17, 1
      %s287 = scalar_select %p286, %s17, 1
      %s288 = smul.addr %s287, 8
      %s289 = scalar_lea.vmem %s2, %s288
      %p290 = scmp.lt.s32.totalorder %s17, 1
      %s291 = scalar_select %p290, %s17, 1
      %s292 = smul.addr %s291, 8
      %s293 = scalar_lea.vmem %s3, %s292
      %p294 = scmp.lt.s32.totalorder %s17, 1
      %s295 = scalar_select %p294, %s17, 1
      %s296 = smul.addr %s295, 8
      %s297 = scalar_lea.vmem %s6, %s296
      %v298 = vld [vmem:[%s281] sm:$0xff]
      %v299 = vld [vmem:[%s285] sm:$0xff]
      %v300 = vld [vmem:[%s289] sm:$0xff]
      %vm301 = vcmask 64512
      %v302 = vsel %vm301, %v298, 0.0
      %303 = vadd.xlane.f32.xlu0 %v302
      %v304 = vpop.xlane.xlu0 %303
      %v305 = vadd.f32 %v304, 1e-10
      %v307 = vsel %vm301, %v298, 0
      %309 = vmatpush.msra.mxu0 0.0
      %310 = vmatpush.msra.mxu0 0.0
      %311 = vmatpush.msra.mxu0 0.0
      %312 = vmatpush.msra.mxu0 0.0
      %313 = vmatpush.msra.mxu0 0.0
      %314 = vmatpush.msra.mxu0 0.0
      %315 = vmatpush.msra.mxu0 0.0
      %316 = vmatpush.msra.mxu0 0.0
      %317 = vmatpush.msra.mxu0 0.0
      %318 = vmatpush.msra.mxu0 0.0
      %319 = vmatpush.msra.mxu0 0.0
      %320 = vmatpush.msra.mxu0 0.0
      %321 = vmatpush.msra.mxu0 0.0
      %322 = vmatpush.msra.mxu0 0.0
      %323 = vmatpush.msra.mxu0 0.0
      %324 = vmatpush.msra.mxu0 %v300
      %325 = vmatmul.f32.gmra.mxu0 %v307
      %v326 = vpop.f32.mrf.mxu0
      %v327 = vadd.f32 0.0, %v326
      %328 = vdwg.mxu0
      %v329 = vrcp.pop %v305
      %v330 = vmul.f32 %v327, %v329
      %v331 = vsub.f32 %v330, %v300
      %333 = vset.pattern.permute.xlu0 0
      %334 = vperm.xlu0 %333, %v299
      %v335 = vpop.permute.xlu0 %334
      %v337 = vmul.f32 %v335, %v331
      %v338 = vadd.f32 %v300, %v337
      %v339 = vld [vmem:[%s293] sm:$0xff]
      %v340 = vadd.f32 %v338, %v339
      %v341 = vld [vmem:[%s4] sm:$0x1]
      %v342 = vld [vmem:[%s5] sm:$0x1]
      %vm343 = vcmask 261120
      %v344 = vsel %vm343, %v340, 0.0
      %345 = vadd.xlane.f32.xlu0 %v344
      %v346 = vpop.xlane.xlu0 %345
      %v347 = vrcp.pop 32.0
      %v348 = vmul.f32 32.0, %v347
      %v349 = vsub.f32 1.0, %v348
      %v350 = vmul.f32 %v347, %v349
      %v351 = vadd.f32 %v347, %v350
      %vm352 = vweird.f32 %v347
      %v353 = vsel %vm352, %v347, %v351
      %v354 = vmul.f32 %v346, %v353
      %v355 = vsub.f32 %v340, %v354
      %v356 = vmul.f32 %v355, %v355
      %v357 = vsel %vm343, %v356, 0.0
      %358 = vadd.xlane.f32.xlu0 %v357
      %v359 = vpop.xlane.xlu0 %358
      %v360 = vmul.f32 %v359, %v353
      %v361 = vadd.f32 %v360, 1e-05
      %v362 = vrsqrt.pop %v361
      %v363 = vmul.f32 %v362, %v361
      %v364 = vmul.f32 %v363, %v362
      %v365 = vmul.f32 0.5, %v364
      %v366 = vsub.f32 1.5, %v365
      %v367 = vmul.f32 %v362, %v366
      %vm368 = vweird.f32 %v361
      %vm369 = vweird.f32 %v362
      %vm370 = vmor %vm368, %vm369
      %v371 = vsel %vm370, %v362, %v367
      %v372 = vmul.f32 %v355, %v371
      %v374 = vperm.slane %v341, 0
      %v376 = vmul.f32 %v372, %v374
      %v378 = vperm.slane %v342, 0
      %v380 = vadd.f32 %v376, %v378
      %381 = vst.msk [vmem:[%s297] sm:$0xff] %vm343, %v380
      %p382 = scmp.lt.s32.totalorder %s17, 1
      %s383 = scalar_select %p382, %s17, 1
      %s384 = smul.addr %s383, 8
      %s385 = scalar_lea.vmem %s6, %s384
      // Predicated region
      $region45: #{_lambda_.4} parent=43 // pred_check
        %p386 = pneg %p181
      $region46: #{_lambda_.4} parent=43 // pred_check_branch
        %388 = sbr.rel (%p386) target = $region48
      $region47: #{_lambda_.4} parent=43 // pred_region
        _
      $region48: #{_lambda_.4} parent=43 // pred_fallthru
        _
    $region44: #{_lambda_.4} parent=5 // pred_fallthru
      _
    %p389 = scmp.le.s32.totalorder 2, %s12
    // Predicated region
    $region49: #{_lambda_.4} parent=5 // pred_check
      %p390 = pneg %p389
    $region50: #{_lambda_.4} parent=5 // pred_check_branch
      %392 = sbr.rel (%p390) target = $region52
    $region51: #{_lambda_.4} parent=5 // pred_region
      %s393 = ssub.s32 %s12, 2
      // Predicated region
      $region53: #{_lambda_.4} parent=51 // pred_check
        %p394 = pneg %p187
      $region54: #{_lambda_.4} parent=51 // pred_check_branch
        %396 = sbr.rel (%p394) target = $region56
      $region55: #{_lambda_.4} parent=51 // pred_region
        %p397 = scmp.lt.s32.totalorder %s18, 1
        %s398 = scalar_select %p397, %s18, 1
        %s399 = smul.addr %s398, 8
        %s400 = scalar_lea.vmem %s6, %s399
      $region56: #{_lambda_.4} parent=51 // pred_fallthru
        _
    $region52: #{_lambda_.4} parent=5 // pred_fallthru
      _
  $region6: #{_lambda_.4} parent=0 // loop_footer
    %s16 = sadd.s32 1, %s12
  $region7: #{_lambda_.4} parent=0 // loop_footer_branch
    %11 = sbr.rel target = $region3
  $region8: #{_lambda_.4} parent=0 // loop_exit
    _

// kernel: _lambda_.5
$region0: #{_lambda_.5}
  #allocation0 [shape = 'u32[]', space=smem, size = 0x4, offset = 0x4, fixed_abs, tag = 'smem constant byte address 0x4 - core index']
  #allocation1 [shape = 'u32[72,128]{1,0:T(1,128)}', space=vmem, size = 0x9000, scoped, tag = 'internal scratch']
  %s0 = inlined_call_operand.vmem [shape: f32[2,8,32], index: 0, kind: input, shape index: {}]
  %s1 = inlined_call_operand.vmem [shape: f32[2,8,8], index: 1, kind: input, shape index: {}]
  %s2 = inlined_call_operand.vmem [shape: bf16[32,96], index: 2, kind: input, shape index: {}]
  %s3 = inlined_call_operand.vmem [shape: f32[1,96], index: 3, kind: input, shape index: {}]
  %s4 = inlined_call_operand.vmem [shape: bf16[32,32], index: 4, kind: input, shape index: {}]
  %s5 = inlined_call_operand.vmem [shape: f32[1,32], index: 5, kind: input, shape index: {}]
  %s6 = inlined_call_operand.vmem [shape: f32[1,32], index: 6, kind: input, shape index: {}]
  %s7 = inlined_call_operand.vmem [shape: f32[1,32], index: 7, kind: input, shape index: {}]
  %s8 = inlined_call_operand.vmem [shape: bf16[32,64], index: 8, kind: input, shape index: {}]
  %s9 = inlined_call_operand.vmem [shape: f32[1,64], index: 9, kind: input, shape index: {}]
  %s10 = inlined_call_operand.vmem [shape: bf16[64,32], index: 10, kind: input, shape index: {}]
  %s11 = inlined_call_operand.vmem [shape: f32[1,32], index: 11, kind: input, shape index: {}]
  %s12 = inlined_call_operand.vmem [shape: f32[1,32], index: 12, kind: input, shape index: {}]
  %s13 = inlined_call_operand.vmem [shape: f32[1,32], index: 13, kind: input, shape index: {}]
  %s14 = inlined_call_operand.vmem [shape: f32[2,8,32], index: 14, kind: output, shape index: {}]
  %s15 = sld [smem:[#allocation0]]
  $region89: #{_lambda_.5} parent=0
    _
  %s17 = ssub.s32 1, %s15
  %s18 = scalar_select 0, %s17, %s15
  loop: start=0, step=1, limit=4
  $region2: #{_lambda_.5} parent=0 // loop_pre_header
    _
  $region3: #{_lambda_.5} parent=0 // loop_header
    %s20 = sphi 0, %s24
    %p21 = scmp.ge.s32.totalorder %s20, 4
    %s30 = sphi 0, %s32
    %s33 = sphi 0, %s30
    %s34 = sphi 0, %s33
    %s50 = sphi 0, %s34
    %s56 = sphi 0, %s58
    %s59 = sphi 0, %s56
    %s60 = sphi 0, %s59
    %s76 = sphi 0, %s60
    %s80 = sphi 0, %s80
    %s82 = sphi 0, %s80
    %s83 = sphi 0, %s82
    %s97 = sphi 0, %s83
    %s101 = sphi 0, %s101
    %s103 = sphi 0, %s101
    %s104 = sphi 0, %s103
    %s118 = sphi 0, %s104
    %s122 = sphi 0, %s122
    %s124 = sphi 0, %s122
    %s125 = sphi 0, %s124
    %s139 = sphi 0, %s125
    %s143 = sphi 0, %s143
    %s145 = sphi 0, %s143
    %s146 = sphi 0, %s145
    %s160 = sphi 0, %s146
    %s164 = sphi 0, %s164
    %s166 = sphi 0, %s164
    %s167 = sphi 0, %s166
    %s181 = sphi 0, %s167
    %s185 = sphi 0, %s185
    %s187 = sphi 0, %s185
    %s188 = sphi 0, %s187
    %s202 = sphi 0, %s188
    %s206 = sphi 0, %s206
    %s208 = sphi 0, %s206
    %s209 = sphi 0, %s208
    %s223 = sphi 0, %s209
    %s227 = sphi 0, %s227
    %s229 = sphi 0, %s227
    %s230 = sphi 0, %s229
    %s244 = sphi 0, %s230
    %s248 = sphi 0, %s248
    %s250 = sphi 0, %s248
    %s251 = sphi 0, %s250
    %s265 = sphi 0, %s251
    %s269 = sphi 0, %s269
    %s271 = sphi 0, %s269
    %s272 = sphi 0, %s271
    %s286 = sphi 0, %s272
    %s290 = sphi 0, %s290
    %s292 = sphi 0, %s290
    %s293 = sphi 0, %s292
    %s307 = sphi 0, %s293
    %s311 = sphi 0, %s311
    %s313 = sphi 0, %s311
    %s314 = sphi 0, %s313
    %s328 = sphi 0, %s314
    %s334 = sphi 0, %s336
    %s337 = sphi 0, %s334
    %s338 = sphi 0, %s337
    %s354 = sphi 0, %s338
  $region4: #{_lambda_.5} parent=0 // loop_header_branch
    %23 = sbr.rel (%p21) target = $region8
  $region5: #{_lambda_.5} parent=0 // loop_body
    %s25 = ssub.s32 %s20, 1
    %s26 = ssub.s32 %s20, 2
    %s27 = sadd.s32 %s20, 1
    %s28 = ssub.s32 %s20, %s27
    %p29 = scmp.eq.s32.totalorder %s28, 0
    %s31 = sadd.s32 %s30, 1
    %s32 = scalar_select %p29, %s30, %s31
    %p35 = pneg %p29
    %p36 = scmp.eq.s32.totalorder %s20, 1
    %p37 = por %p35, %p36
    %p38 = scmp.ne.s32.totalorder %s30, %s33
    %p39 = scmp.eq.s32.totalorder %s20, 0
    %p40 = por %p38, %p39
    %p41 = scmp.ne.s32.totalorder %s30, %s33
    %p42 = scmp.eq.s32.totalorder %s25, 1
    %p43 = por %p41, %p42
    %p44 = scmp.ne.s32.totalorder %s33, %s34
    %p45 = scmp.eq.s32.totalorder %s25, 0
    %p46 = por %p44, %p45
    %p47 = scmp.ne.s32.totalorder %s33, %s34
    %p48 = scmp.eq.s32.totalorder %s26, 1
    %p49 = por %p47, %p48
    %p51 = scmp.ne.s32.totalorder %s34, %s50
    %p52 = scmp.eq.s32.totalorder %s26, 0
    %p53 = por %p51, %p52
    %s54 = ssub.s32 %s20, %s27
    %p55 = scmp.eq.s32.totalorder %s54, 0
    %s57 = sadd.s32 %s56, 1
    %s58 = scalar_select %p55, %s56, %s57
    %p61 = pneg %p55
    %p62 = scmp.eq.s32.totalorder %s20, 1
    %p63 = por %p61, %p62
    %p64 = scmp.ne.s32.totalorder %s56, %s59
    %p65 = scmp.eq.s32.totalorder %s20, 0
    %p66 = por %p64, %p65
    %p67 = scmp.ne.s32.totalorder %s56, %s59
    %p68 = scmp.eq.s32.totalorder %s25, 1
    %p69 = por %p67, %p68
    %p70 = scmp.ne.s32.totalorder %s59, %s60
    %p71 = scmp.eq.s32.totalorder %s25, 0
    %p72 = por %p70, %p71
    %p73 = scmp.ne.s32.totalorder %s59, %s60
    %p74 = scmp.eq.s32.totalorder %s26, 1
    %p75 = por %p73, %p74
    %p77 = scmp.ne.s32.totalorder %s60, %s76
    %p78 = scmp.eq.s32.totalorder %s26, 0
    %p79 = por %p77, %p78
    %s81 = sadd.s32 %s80, 1
    %p84 = scmp.eq.s32.totalorder %s20, 1
    %p85 = scmp.ne.s32.totalorder %s80, %s82
    %p86 = scmp.eq.s32.totalorder %s20, 0
    %p87 = por %p85, %p86
    %p88 = scmp.ne.s32.totalorder %s80, %s82
    %p89 = scmp.eq.s32.totalorder %s25, 1
    %p90 = por %p88, %p89
    %p91 = scmp.ne.s32.totalorder %s82, %s83
    %p92 = scmp.eq.s32.totalorder %s25, 0
    %p93 = por %p91, %p92
    %p94 = scmp.ne.s32.totalorder %s82, %s83
    %p95 = scmp.eq.s32.totalorder %s26, 1
    %p96 = por %p94, %p95
    %p98 = scmp.ne.s32.totalorder %s83, %s97
    %p99 = scmp.eq.s32.totalorder %s26, 0
    %p100 = por %p98, %p99
    %s102 = sadd.s32 %s101, 1
    %p105 = scmp.eq.s32.totalorder %s20, 1
    %p106 = scmp.ne.s32.totalorder %s101, %s103
    %p107 = scmp.eq.s32.totalorder %s20, 0
    %p108 = por %p106, %p107
    %p109 = scmp.ne.s32.totalorder %s101, %s103
    %p110 = scmp.eq.s32.totalorder %s25, 1
    %p111 = por %p109, %p110
    %p112 = scmp.ne.s32.totalorder %s103, %s104
    %p113 = scmp.eq.s32.totalorder %s25, 0
    %p114 = por %p112, %p113
    %p115 = scmp.ne.s32.totalorder %s103, %s104
    %p116 = scmp.eq.s32.totalorder %s26, 1
    %p117 = por %p115, %p116
    %p119 = scmp.ne.s32.totalorder %s104, %s118
    %p120 = scmp.eq.s32.totalorder %s26, 0
    %p121 = por %p119, %p120
    %s123 = sadd.s32 %s122, 1
    %p126 = scmp.eq.s32.totalorder %s20, 1
    %p127 = scmp.ne.s32.totalorder %s122, %s124
    %p128 = scmp.eq.s32.totalorder %s20, 0
    %p129 = por %p127, %p128
    %p130 = scmp.ne.s32.totalorder %s122, %s124
    %p131 = scmp.eq.s32.totalorder %s25, 1
    %p132 = por %p130, %p131
    %p133 = scmp.ne.s32.totalorder %s124, %s125
    %p134 = scmp.eq.s32.totalorder %s25, 0
    %p135 = por %p133, %p134
    %p136 = scmp.ne.s32.totalorder %s124, %s125
    %p137 = scmp.eq.s32.totalorder %s26, 1
    %p138 = por %p136, %p137
    %p140 = scmp.ne.s32.totalorder %s125, %s139
    %p141 = scmp.eq.s32.totalorder %s26, 0
    %p142 = por %p140, %p141
    %s144 = sadd.s32 %s143, 1
    %p147 = scmp.eq.s32.totalorder %s20, 1
    %p148 = scmp.ne.s32.totalorder %s143, %s145
    %p149 = scmp.eq.s32.totalorder %s20, 0
    %p150 = por %p148, %p149
    %p151 = scmp.ne.s32.totalorder %s143, %s145
    %p152 = scmp.eq.s32.totalorder %s25, 1
    %p153 = por %p151, %p152
    %p154 = scmp.ne.s32.totalorder %s145, %s146
    %p155 = scmp.eq.s32.totalorder %s25, 0
    %p156 = por %p154, %p155
    %p157 = scmp.ne.s32.totalorder %s145, %s146
    %p158 = scmp.eq.s32.totalorder %s26, 1
    %p159 = por %p157, %p158
    %p161 = scmp.ne.s32.totalorder %s146, %s160
    %p162 = scmp.eq.s32.totalorder %s26, 0
    %p163 = por %p161, %p162
    %s165 = sadd.s32 %s164, 1
    %p168 = scmp.eq.s32.totalorder %s20, 1
    %p169 = scmp.ne.s32.totalorder %s164, %s166
    %p170 = scmp.eq.s32.totalorder %s20, 0
    %p171 = por %p169, %p170
    %p172 = scmp.ne.s32.totalorder %s164, %s166
    %p173 = scmp.eq.s32.totalorder %s25, 1
    %p174 = por %p172, %p173
    %p175 = scmp.ne.s32.totalorder %s166, %s167
    %p176 = scmp.eq.s32.totalorder %s25, 0
    %p177 = por %p175, %p176
    %p178 = scmp.ne.s32.totalorder %s166, %s167
    %p179 = scmp.eq.s32.totalorder %s26, 1
    %p180 = por %p178, %p179
    %p182 = scmp.ne.s32.totalorder %s167, %s181
    %p183 = scmp.eq.s32.totalorder %s26, 0
    %p184 = por %p182, %p183
    %s186 = sadd.s32 %s185, 1
    %p189 = scmp.eq.s32.totalorder %s20, 1
    %p190 = scmp.ne.s32.totalorder %s185, %s187
    %p191 = scmp.eq.s32.totalorder %s20, 0
    %p192 = por %p190, %p191
    %p193 = scmp.ne.s32.totalorder %s185, %s187
    %p194 = scmp.eq.s32.totalorder %s25, 1
    %p195 = por %p193, %p194
    %p196 = scmp.ne.s32.totalorder %s187, %s188
    %p197 = scmp.eq.s32.totalorder %s25, 0
    %p198 = por %p196, %p197
    %p199 = scmp.ne.s32.totalorder %s187, %s188
    %p200 = scmp.eq.s32.totalorder %s26, 1
    %p201 = por %p199, %p200
    %p203 = scmp.ne.s32.totalorder %s188, %s202
    %p204 = scmp.eq.s32.totalorder %s26, 0
    %p205 = por %p203, %p204
    %s207 = sadd.s32 %s206, 1
    %p210 = scmp.eq.s32.totalorder %s20, 1
    %p211 = scmp.ne.s32.totalorder %s206, %s208
    %p212 = scmp.eq.s32.totalorder %s20, 0
    %p213 = por %p211, %p212
    %p214 = scmp.ne.s32.totalorder %s206, %s208
    %p215 = scmp.eq.s32.totalorder %s25, 1
    %p216 = por %p214, %p215
    %p217 = scmp.ne.s32.totalorder %s208, %s209
    %p218 = scmp.eq.s32.totalorder %s25, 0
    %p219 = por %p217, %p218
    %p220 = scmp.ne.s32.totalorder %s208, %s209
    %p221 = scmp.eq.s32.totalorder %s26, 1
    %p222 = por %p220, %p221
    %p224 = scmp.ne.s32.totalorder %s209, %s223
    %p225 = scmp.eq.s32.totalorder %s26, 0
    %p226 = por %p224, %p225
    %s228 = sadd.s32 %s227, 1
    %p231 = scmp.eq.s32.totalorder %s20, 1
    %p232 = scmp.ne.s32.totalorder %s227, %s229
    %p233 = scmp.eq.s32.totalorder %s20, 0
    %p234 = por %p232, %p233
    %p235 = scmp.ne.s32.totalorder %s227, %s229
    %p236 = scmp.eq.s32.totalorder %s25, 1
    %p237 = por %p235, %p236
    %p238 = scmp.ne.s32.totalorder %s229, %s230
    %p239 = scmp.eq.s32.totalorder %s25, 0
    %p240 = por %p238, %p239
    %p241 = scmp.ne.s32.totalorder %s229, %s230
    %p242 = scmp.eq.s32.totalorder %s26, 1
    %p243 = por %p241, %p242
    %p245 = scmp.ne.s32.totalorder %s230, %s244
    %p246 = scmp.eq.s32.totalorder %s26, 0
    %p247 = por %p245, %p246
    %s249 = sadd.s32 %s248, 1
    %p252 = scmp.eq.s32.totalorder %s20, 1
    %p253 = scmp.ne.s32.totalorder %s248, %s250
    %p254 = scmp.eq.s32.totalorder %s20, 0
    %p255 = por %p253, %p254
    %p256 = scmp.ne.s32.totalorder %s248, %s250
    %p257 = scmp.eq.s32.totalorder %s25, 1
    %p258 = por %p256, %p257
    %p259 = scmp.ne.s32.totalorder %s250, %s251
    %p260 = scmp.eq.s32.totalorder %s25, 0
    %p261 = por %p259, %p260
    %p262 = scmp.ne.s32.totalorder %s250, %s251
    %p263 = scmp.eq.s32.totalorder %s26, 1
    %p264 = por %p262, %p263
    %p266 = scmp.ne.s32.totalorder %s251, %s265
    %p267 = scmp.eq.s32.totalorder %s26, 0
    %p268 = por %p266, %p267
    %s270 = sadd.s32 %s269, 1
    %p273 = scmp.eq.s32.totalorder %s20, 1
    %p274 = scmp.ne.s32.totalorder %s269, %s271
    %p275 = scmp.eq.s32.totalorder %s20, 0
    %p276 = por %p274, %p275
    %p277 = scmp.ne.s32.totalorder %s269, %s271
    %p278 = scmp.eq.s32.totalorder %s25, 1
    %p279 = por %p277, %p278
    %p280 = scmp.ne.s32.totalorder %s271, %s272
    %p281 = scmp.eq.s32.totalorder %s25, 0
    %p282 = por %p280, %p281
    %p283 = scmp.ne.s32.totalorder %s271, %s272
    %p284 = scmp.eq.s32.totalorder %s26, 1
    %p285 = por %p283, %p284
    %p287 = scmp.ne.s32.totalorder %s272, %s286
    %p288 = scmp.eq.s32.totalorder %s26, 0
    %p289 = por %p287, %p288
    %s291 = sadd.s32 %s290, 1
    %p294 = scmp.eq.s32.totalorder %s20, 1
    %p295 = scmp.ne.s32.totalorder %s290, %s292
    %p296 = scmp.eq.s32.totalorder %s20, 0
    %p297 = por %p295, %p296
    %p298 = scmp.ne.s32.totalorder %s290, %s292
    %p299 = scmp.eq.s32.totalorder %s25, 1
    %p300 = por %p298, %p299
    %p301 = scmp.ne.s32.totalorder %s292, %s293
    %p302 = scmp.eq.s32.totalorder %s25, 0
    %p303 = por %p301, %p302
    %p304 = scmp.ne.s32.totalorder %s292, %s293
    %p305 = scmp.eq.s32.totalorder %s26, 1
    %p306 = por %p304, %p305
    %p308 = scmp.ne.s32.totalorder %s293, %s307
    %p309 = scmp.eq.s32.totalorder %s26, 0
    %p310 = por %p308, %p309
    %s312 = sadd.s32 %s311, 1
    %p315 = scmp.eq.s32.totalorder %s20, 1
    %p316 = scmp.ne.s32.totalorder %s311, %s313
    %p317 = scmp.eq.s32.totalorder %s20, 0
    %p318 = por %p316, %p317
    %p319 = scmp.ne.s32.totalorder %s311, %s313
    %p320 = scmp.eq.s32.totalorder %s25, 1
    %p321 = por %p319, %p320
    %p322 = scmp.ne.s32.totalorder %s313, %s314
    %p323 = scmp.eq.s32.totalorder %s25, 0
    %p324 = por %p322, %p323
    %p325 = scmp.ne.s32.totalorder %s313, %s314
    %p326 = scmp.eq.s32.totalorder %s26, 1
    %p327 = por %p325, %p326
    %p329 = scmp.ne.s32.totalorder %s314, %s328
    %p330 = scmp.eq.s32.totalorder %s26, 0
    %p331 = por %p329, %p330
    %s332 = ssub.s32 %s20, %s27
    %p333 = scmp.eq.s32.totalorder %s332, 0
    %s335 = sadd.s32 %s334, 1
    %s336 = scalar_select %p333, %s334, %s335
    %p339 = pneg %p333
    %p340 = scmp.eq.s32.totalorder %s20, 1
    %p341 = por %p339, %p340
    %p342 = scmp.ne.s32.totalorder %s334, %s337
    %p343 = scmp.eq.s32.totalorder %s20, 0
    %p344 = por %p342, %p343
    %p345 = scmp.ne.s32.totalorder %s334, %s337
    %p346 = scmp.eq.s32.totalorder %s25, 1
    %p347 = por %p345, %p346
    %p348 = scmp.ne.s32.totalorder %s337, %s338
    %p349 = scmp.eq.s32.totalorder %s25, 0
    %p350 = por %p348, %p349
    %p351 = scmp.ne.s32.totalorder %s337, %s338
    %p352 = scmp.eq.s32.totalorder %s26, 1
    %p353 = por %p351, %p352
    %p355 = scmp.ne.s32.totalorder %s338, %s354
    %p356 = scmp.eq.s32.totalorder %s26, 0
    %p357 = por %p355, %p356
    %p358 = scmp.le.s32.totalorder 1, %s20
    %p359 = scmp.lt.s32.totalorder %s20, 3
    %p360 = pnand %p358, %p359
    %p361 = pneg %p360
    // Predicated region
    $region9: #{_lambda_.5} parent=5 // pred_check
      _
    $region10: #{_lambda_.5} parent=5 // pred_check_branch
      %363 = sbr.rel (%p360) target = $region12
    $region11: #{_lambda_.5} parent=5 // pred_region
      %s364 = ssub.s32 %s20, 1
      // Predicated region
      $region13: #{_lambda_.5} parent=11 // pred_check
        %p365 = pneg %p93
      $region14: #{_lambda_.5} parent=11 // pred_check_branch
        %367 = sbr.rel (%p365) target = $region16
      $region15: #{_lambda_.5} parent=11 // pred_region
        _
      $region16: #{_lambda_.5} parent=11 // pred_fallthru
        _
      // Predicated region
      $region17: #{_lambda_.5} parent=11 // pred_check
        %p368 = pneg %p114
      $region18: #{_lambda_.5} parent=11 // pred_check_branch
        %370 = sbr.rel (%p368) target = $region20
      $region19: #{_lambda_.5} parent=11 // pred_region
        _
      $region20: #{_lambda_.5} parent=11 // pred_fallthru
        _
      // Predicated region
      $region21: #{_lambda_.5} parent=11 // pred_check
        %p371 = pneg %p135
      $region22: #{_lambda_.5} parent=11 // pred_check_branch
        %373 = sbr.rel (%p371) target = $region24
      $region23: #{_lambda_.5} parent=11 // pred_region
        _
      $region24: #{_lambda_.5} parent=11 // pred_fallthru
        _
      // Predicated region
      $region25: #{_lambda_.5} parent=11 // pred_check
        %p374 = pneg %p156
      $region26: #{_lambda_.5} parent=11 // pred_check_branch
        %376 = sbr.rel (%p374) target = $region28
      $region27: #{_lambda_.5} parent=11 // pred_region
        _
      $region28: #{_lambda_.5} parent=11 // pred_fallthru
        _
      // Predicated region
      $region29: #{_lambda_.5} parent=11 // pred_check
        %p377 = pneg %p177
      $region30: #{_lambda_.5} parent=11 // pred_check_branch
        %379 = sbr.rel (%p377) target = $region32
      $region31: #{_lambda_.5} parent=11 // pred_region
        _
      $region32: #{_lambda_.5} parent=11 // pred_fallthru
        _
      // Predicated region
      $region33: #{_lambda_.5} parent=11 // pred_check
        %p380 = pneg %p198
      $region34: #{_lambda_.5} parent=11 // pred_check_branch
        %382 = sbr.rel (%p380) target = $region36
      $region35: #{_lambda_.5} parent=11 // pred_region
        _
      $region36: #{_lambda_.5} parent=11 // pred_fallthru
        _
      // Predicated region
      $region37: #{_lambda_.5} parent=11 // pred_check
        %p383 = pneg %p219
      $region38: #{_lambda_.5} parent=11 // pred_check_branch
        %385 = sbr.rel (%p383) target = $region40
      $region39: #{_lambda_.5} parent=11 // pred_region
        _
      $region40: #{_lambda_.5} parent=11 // pred_fallthru
        _
      // Predicated region
      $region41: #{_lambda_.5} parent=11 // pred_check
        %p386 = pneg %p240
      $region42: #{_lambda_.5} parent=11 // pred_check_branch
        %388 = sbr.rel (%p386) target = $region44
      $region43: #{_lambda_.5} parent=11 // pred_region
        _
      $region44: #{_lambda_.5} parent=11 // pred_fallthru
        _
      // Predicated region
      $region45: #{_lambda_.5} parent=11 // pred_check
        %p389 = pneg %p261
      $region46: #{_lambda_.5} parent=11 // pred_check_branch
        %391 = sbr.rel (%p389) target = $region48
      $region47: #{_lambda_.5} parent=11 // pred_region
        _
      $region48: #{_lambda_.5} parent=11 // pred_fallthru
        _
      // Predicated region
      $region49: #{_lambda_.5} parent=11 // pred_check
        %p392 = pneg %p282
      $region50: #{_lambda_.5} parent=11 // pred_check_branch
        %394 = sbr.rel (%p392) target = $region52
      $region51: #{_lambda_.5} parent=11 // pred_region
        _
      $region52: #{_lambda_.5} parent=11 // pred_fallthru
        _
      // Predicated region
      $region53: #{_lambda_.5} parent=11 // pred_check
        %p395 = pneg %p303
      $region54: #{_lambda_.5} parent=11 // pred_check_branch
        %397 = sbr.rel (%p395) target = $region56
      $region55: #{_lambda_.5} parent=11 // pred_region
        _
      $region56: #{_lambda_.5} parent=11 // pred_fallthru
        _
      // Predicated region
      $region57: #{_lambda_.5} parent=11 // pred_check
        %p398 = pneg %p324
      $region58: #{_lambda_.5} parent=11 // pred_check_branch
        %400 = sbr.rel (%p398) target = $region60
      $region59: #{_lambda_.5} parent=11 // pred_region
        _
      $region60: #{_lambda_.5} parent=11 // pred_fallthru
        _
    $region12: #{_lambda_.5} parent=5 // pred_fallthru
      _
    %p401 = scmp.lt.s32.totalorder %s20, 2
    // Predicated region
    $region61: #{_lambda_.5} parent=5 // pred_check
      %p402 = pneg %p401
    $region62: #{_lambda_.5} parent=5 // pred_check_branch
      %404 = sbr.rel (%p402) target = $region64
    $region63: #{_lambda_.5} parent=5 // pred_region
      // Predicated region
      $region65: #{_lambda_.5} parent=63 // pred_check
        %p405 = pneg %p40
      $region66: #{_lambda_.5} parent=63 // pred_check_branch
        %407 = sbr.rel (%p405) target = $region68
      $region67: #{_lambda_.5} parent=63 // pred_region
        %p408 = scmp.lt.s32.totalorder %s20, 1
        %s409 = scalar_select %p408, %s20, 1
        %s410 = smul.addr %s409, 8
        %s411 = scalar_lea.vmem %s0, %s410
      $region68: #{_lambda_.5} parent=63 // pred_fallthru
        _
      // Predicated region
      $region69: #{_lambda_.5} parent=63 // pred_check
        %p412 = pneg %p66
      $region70: #{_lambda_.5} parent=63 // pred_check_branch
        %414 = sbr.rel (%p412) target = $region72
      $region71: #{_lambda_.5} parent=63 // pred_region
        %p415 = scmp.lt.s32.totalorder %s20, 1
        %s416 = scalar_select %p415, %s20, 1
        %s417 = smul.addr %s416, 8
        %s418 = scalar_lea.vmem %s1, %s417
      $region72: #{_lambda_.5} parent=63 // pred_fallthru
        _
    $region64: #{_lambda_.5} parent=5 // pred_fallthru
      _
    %p419 = scmp.le.s32.totalorder 1, %s20
    %p420 = scmp.lt.s32.totalorder %s20, 3
    %p421 = pnand %p419, %p420
    %p422 = pneg %p421
    // Predicated region
    $region73: #{_lambda_.5} parent=5 // pred_check
      _
    $region74: #{_lambda_.5} parent=5 // pred_check_branch
      %424 = sbr.rel (%p421) target = $region76
    $region75: #{_lambda_.5} parent=5 // pred_region
      %s425 = ssub.s32 %s20, 1
      %p426 = scmp.lt.s32.totalorder %s25, 1
      %s427 = scalar_select %p426, %s25, 1
      %s428 = smul.addr %s427, 8
      %s429 = scalar_lea.vmem %s0, %s428
      %p430 = pneg %p46
      %p431 = pneg %p43
      %p432 = scmp.lt.s32.totalorder %s25, 1
      %s433 = scalar_select %p432, %s25, 1
      %s434 = smul.addr %s433, 8
      %s435 = scalar_lea.vmem %s1, %s434
      %p436 = pneg %p72
      %p437 = pneg %p69
      %p438 = pneg %p93
      %p439 = pneg %p90
      %p440 = pneg %p114
      %p441 = pneg %p111
      %p442 = pneg %p135
      %p443 = pneg %p132
      %p444 = pneg %p156
      %p445 = pneg %p153
      %p446 = pneg %p177
      %p447 = pneg %p174
      %p448 = pneg %p198
      %p449 = pneg %p195
      %p450 = pneg %p219
      %p451 = pneg %p216
      %p452 = pneg %p240
      %p453 = pneg %p237
      %p454 = pneg %p261
      %p455 = pneg %p258
      %p456 = pneg %p282
      %p457 = pneg %p279
      %p458 = pneg %p303
      %p459 = pneg %p300
      %p460 = pneg %p324
      %p461 = pneg %p321
      %p462 = pneg %p350
      %p463 = pneg %p347
      %p464 = scmp.lt.s32.totalorder %s25, 1
      %s465 = scalar_select %p464, %s25, 1
      %s466 = smul.addr %s465, 8
      %s467 = scalar_lea.vmem %s14, %s466
      %p468 = scmp.lt.s32.totalorder %s25, 1
      %s469 = scalar_select %p468, %s25, 1
      %s470 = smul.addr %s469, 8
      %s471 = scalar_lea.vmem %s0, %s470
      %p472 = scmp.lt.s32.totalorder %s25, 1
      %s473 = scalar_select %p472, %s25, 1
      %s474 = smul.addr %s473, 8
      %s475 = scalar_lea.vmem %s1, %s474
      %p476 = scmp.lt.s32.totalorder %s25, 1
      %s477 = scalar_select %p476, %s25, 1
      %s478 = smul.addr %s477, 8
      %s479 = scalar_lea.vmem %s14, %s478
      %v481 = vld [vmem:[%s471] sm:$0xff]
      %v482 = vld [vmem:[%s475] sm:$0xff]
      %v483 = vpack.c.bf16 %v481, %v481
      %v484 = vld [vmem:[%s2] sm:$0xf]
      %v485 = vld [vmem:[%s2 + $0x4] sm:$0xf]
      %v486 = vld [vmem:[%s2 + $0x8] sm:$0xf]
      %v487 = vld [vmem:[%s2 + $0xc] sm:$0xf]
      %v488 = vld [vmem:[%s3] sm:$0x1]
      %v490 = vperm.slane %v488, 0
      %v496 = vunpack.c.l.b16 %v484
      %v497 = vunpack.c.l.b16 %v485
      %v498 = vunpack.c.l.b16 %v486
      %v499 = vunpack.c.l.b16 %v487
      %v500 = vpack.c.b16 %v497, %v496
      %v501 = vpack.c.b16 %v499, %v498
      %vm504 = vcmask 261120
      %v506 = vsel %vm504, %v483, 0
      %508 = vmatpush.bf16.msra.mxu0 0
      %509 = vmatpush.bf16.msra.mxu0 0
      %510 = vmatpush.bf16.msra.mxu0 0
      %511 = vmatpush.bf16.msra.mxu0 0
      %512 = vmatpush.bf16.msra.mxu0 0
      %513 = vmatpush.bf16.msra.mxu0 0
      %514 = vmatpush.bf16.msra.mxu0 %v501
      %515 = vmatpush.bf16.msra.mxu0 %v500
      %516 = vmatmul.bf16.gmra.mxu0 %v506
      %v517 = vpop.f32.mrf.mxu0
      %v518 = vadd.f32 %v490, %v517
      %v519 = vpop.f32.mrf.mxu0
      %520 = vdwg.mxu0
      %v521 = vmul.f32 %v518, 0.35355338
      %v522 = vpack.c.bf16 %v521, %v521
      %v523 = vpack.c.bf16 %v518, %v518
      %525 = vrot.lane.b32.xlu0 %v523, 96
      %v526 = vpop.permute.xlu0 %525
      %vm527 = vcmask 64512
      %v529 = vsel %vm527, %v522, 0
      %v532 = vsel %vm527, %v526, 0
      %534 = vmatpush.bf16.xpose.msra.mxu0 0
      %535 = vmatpush.bf16.xpose.msra.mxu0 0
      %536 = vmatpush.bf16.xpose.msra.mxu0 0
      %537 = vmatpush.bf16.xpose.msra.mxu0 0
      %538 = vmatpush.bf16.xpose.msra.mxu0 0
      %539 = vmatpush.bf16.xpose.msra.mxu0 0
      %540 = vmatpush.bf16.xpose.msra.mxu0 0
      %541 = vmatpush.bf16.xpose.msra.mxu0 %v532
      %542 = vmatmul.bf16.gmra.mxu0 %v529
      %v543 = vpop.f32.mrf.mxu0
      %v544 = vadd.f32 %v482, %v543
      %v545 = vpop.f32.mrf.mxu0
      %546 = vdwg.mxu0
      %v547 = vsel %vm527, %v544, -inf
      %548 = vmax.xlane.f32.xlu0 %v547
      %v549 = vpop.xlane.xlu0 %548
      %v550 = vsub.f32 %v544, %v549
      %v551 = vmul.f32 %v550, 1.442695
      %v552 = vpow.pop %v551
      %v553 = vsel %vm527, %v552, 0.0
      %554 = vadd.xlane.f32.xlu0 %v553
      %v555 = vpop.xlane.xlu0 %554
      %v556 = vrcp.pop %v555
      %v557 = vmul.f32 %v552, %v556
      %v558 = vpack.c.bf16 %v557, %v557
      %559 = vrot.lane.b32.xlu0 %v523, 64
      %v560 = vpop.permute.xlu0 %559
      %v562 = vsel %vm527, %v558, 0
      %vm564 = vcmask 1043456
      %v566 = vsel %vm564, %v560, 0
      %568 = vmatpush.bf16.msra.mxu0 0
      %569 = vmatpush.bf16.msra.mxu0 0
      %570 = vmatpush.bf16.msra.mxu0 0
      %571 = vmatpush.bf16.msra.mxu0 0
      %572 = vmatpush.bf16.msra.mxu0 0
      %573 = vmatpush.bf16.msra.mxu0 0
      %574 = vmatpush.bf16.msra.mxu0 0
      %575 = vmatpush.bf16.msra.mxu0 %v566
      %576 = vmatmul.bf16.gmra.mxu0 %v562
      %v577 = vpop.f32.mrf.mxu0
      %v578 = vadd.f32 0.0, %v577
      %v579 = vpop.f32.mrf.mxu0
      %580 = vdwg.mxu0
      %582 = vrot.lane.b32.xlu0 %v522, 120
      %v583 = vpop.permute.xlu0 %582
      %584 = vrot.lane.b32.xlu0 %v523, 88
      %v585 = vpop.permute.xlu0 %584
      %v587 = vsel %vm527, %v583, 0
      %v590 = vsel %vm527, %v585, 0
      %592 = vmatpush.bf16.xpose.msra.mxu0 0
      %593 = vmatpush.bf16.xpose.msra.mxu0 0
      %594 = vmatpush.bf16.xpose.msra.mxu0 0
      %595 = vmatpush.bf16.xpose.msra.mxu0 0
      %596 = vmatpush.bf16.xpose.msra.mxu0 0
      %597 = vmatpush.bf16.xpose.msra.mxu0 0
      %598 = vmatpush.bf16.xpose.msra.mxu0 0
      %599 = vmatpush.bf16.xpose.msra.mxu0 %v590
      %600 = vmatmul.bf16.gmra.mxu0 %v587
      %v601 = vpop.f32.mrf.mxu0
      %v602 = vadd.f32 %v482, %v601
      %v603 = vpop.f32.mrf.mxu0
      %604 = vdwg.mxu0
      %v605 = vsel %vm527, %v602, -inf
      %606 = vmax.xlane.f32.xlu0 %v605
      %v607 = vpop.xlane.xlu0 %606
      %v608 = vsub.f32 %v602, %v607
      %v609 = vmul.f32 %v608, 1.442695
      %v610 = vpow.pop %v609
      %v611 = vsel %vm527, %v610, 0.0
      %612 = vadd.xlane.f32.xlu0 %v611
      %v613 = vpop.xlane.xlu0 %612
      %v614 = vrcp.pop %v613
      %v615 = vmul.f32 %v610, %v614
      %v616 = vpack.c.bf16 %v615, %v615
      %617 = vrot.lane.b32.xlu0 %v523, 56
      %v618 = vpop.permute.xlu0 %617
      %v620 = vsel %vm527, %v616, 0
      %v623 = vsel %vm564, %v618, 0
      %625 = vmatpush.bf16.msra.mxu0 0
      %626 = vmatpush.bf16.msra.mxu0 0
      %627 = vmatpush.bf16.msra.mxu0 0
      %628 = vmatpush.bf16.msra.mxu0 0
      %629 = vmatpush.bf16.msra.mxu0 0
      %630 = vmatpush.bf16.msra.mxu0 0
      %631 = vmatpush.bf16.msra.mxu0 0
      %632 = vmatpush.bf16.msra.mxu0 %v623
      %633 = vmatmul.bf16.gmra.mxu0 %v620
      %v634 = vpop.f32.mrf.mxu0
      %v635 = vadd.f32 0.0, %v634
      %v636 = vpop.f32.mrf.mxu0
      %637 = vdwg.mxu0
      %638 = vrot.lane.b32.xlu0 %v522, 112
      %v639 = vpop.permute.xlu0 %638
      %640 = vrot.lane.b32.xlu0 %v523, 80
      %v641 = vpop.permute.xlu0 %640
      %v643 = vsel %vm527, %v639, 0
      %v646 = vsel %vm527, %v641, 0
      %648 = vmatpush.bf16.xpose.msra.mxu0 0
      %649 = vmatpush.bf16.xpose.msra.mxu0 0
      %650 = vmatpush.bf16.xpose.msra.mxu0 0
      %651 = vmatpush.bf16.xpose.msra.mxu0 0
      %652 = vmatpush.bf16.xpose.msra.mxu0 0
      %653 = vmatpush.bf16.xpose.msra.mxu0 0
      %654 = vmatpush.bf16.xpose.msra.mxu0 0
      %655 = vmatpush.bf16.xpose.msra.mxu0 %v646
      %656 = vmatmul.bf16.gmra.mxu0 %v643
      %v657 = vpop.f32.mrf.mxu0
      %v658 = vadd.f32 %v482, %v657
      %v659 = vpop.f32.mrf.mxu0
      %660 = vdwg.mxu0
      %v661 = vsel %vm527, %v658, -inf
      %662 = vmax.xlane.f32.xlu0 %v661
      %v663 = vpop.xlane.xlu0 %662
      %v664 = vsub.f32 %v658, %v663
      %v665 = vmul.f32 %v664, 1.442695
      %v666 = vpow.pop %v665
      %v667 = vsel %vm527, %v666, 0.0
      %668 = vadd.xlane.f32.xlu0 %v667
      %v669 = vpop.xlane.xlu0 %668
      %v670 = vrcp.pop %v669
      %v671 = vmul.f32 %v666, %v670
      %v672 = vpack.c.bf16 %v671, %v671
      %673 = vrot.lane.b32.xlu0 %v523, 48
      %v674 = vpop.permute.xlu0 %673
      %v676 = vsel %vm527, %v672, 0
      %v679 = vsel %vm564, %v674, 0
      %681 = vmatpush.bf16.msra.mxu0 0
      %682 = vmatpush.bf16.msra.mxu0 0
      %683 = vmatpush.bf16.msra.mxu0 0
      %684 = vmatpush.bf16.msra.mxu0 0
      %685 = vmatpush.bf16.msra.mxu0 0
      %686 = vmatpush.bf16.msra.mxu0 0
      %687 = vmatpush.bf16.msra.mxu0 0
      %688 = vmatpush.bf16.msra.mxu0 %v679
      %689 = vmatmul.bf16.gmra.mxu0 %v676
      %v690 = vpop.f32.mrf.mxu0
      %v691 = vadd.f32 0.0, %v690
      %v692 = vpop.f32.mrf.mxu0
      %693 = vdwg.mxu0
      %694 = vrot.lane.b32.xlu0 %v522, 104
      %v695 = vpop.permute.xlu0 %694
      %696 = vrot.lane.b32.xlu0 %v523, 72
      %v697 = vpop.permute.xlu0 %696
      %v699 = vsel %vm527, %v695, 0
      %v702 = vsel %vm527, %v697, 0
      %704 = vmatpush.bf16.xpose.msra.mxu0 0
      %705 = vmatpush.bf16.xpose.msra.mxu0 0
      %706 = vmatpush.bf16.xpose.msra.mxu0 0
      %707 = vmatpush.bf16.xpose.msra.mxu0 0
      %708 = vmatpush.bf16.xpose.msra.mxu0 0
      %709 = vmatpush.bf16.xpose.msra.mxu0 0
      %710 = vmatpush.bf16.xpose.msra.mxu0 0
      %711 = vmatpush.bf16.xpose.msra.mxu0 %v702
      %712 = vmatmul.bf16.gmra.mxu0 %v699
      %v713 = vpop.f32.mrf.mxu0
      %v714 = vadd.f32 %v482, %v713
      %v715 = vpop.f32.mrf.mxu0
      %716 = vdwg.mxu0
      %v717 = vsel %vm527, %v714, -inf
      %718 = vmax.xlane.f32.xlu0 %v717
      %v719 = vpop.xlane.xlu0 %718
      %v720 = vsub.f32 %v714, %v719
      %v721 = vmul.f32 %v720, 1.442695
      %v722 = vpow.pop %v721
      %v723 = vsel %vm527, %v722, 0.0
      %724 = vadd.xlane.f32.xlu0 %v723
      %v725 = vpop.xlane.xlu0 %724
      %v726 = vrcp.pop %v725
      %v727 = vmul.f32 %v722, %v726
      %v728 = vpack.c.bf16 %v727, %v727
      %729 = vrot.lane.b32.xlu0 %v523, 40
      %v730 = vpop.permute.xlu0 %729
      %v732 = vsel %vm527, %v728, 0
      %v735 = vsel %vm564, %v730, 0
      %737 = vmatpush.bf16.msra.mxu0 0
      %738 = vmatpush.bf16.msra.mxu0 0
      %739 = vmatpush.bf16.msra.mxu0 0
      %740 = vmatpush.bf16.msra.mxu0 0
      %741 = vmatpush.bf16.msra.mxu0 0
      %742 = vmatpush.bf16.msra.mxu0 0
      %743 = vmatpush.bf16.msra.mxu0 0
      %744 = vmatpush.bf16.msra.mxu0 %v735
      %745 = vmatmul.bf16.gmra.mxu0 %v732
      %v746 = vpop.f32.mrf.mxu0
      %v747 = vadd.f32 0.0, %v746
      %v748 = vpop.f32.mrf.mxu0
      %749 = vdwg.mxu0
      %751 = vrot.lane.b32.xlu0 %v635, 8
      %v752 = vpop.permute.xlu0 %751
      %755 = vrot.lane.b32.xlu0 %v691, 16
      %v756 = vpop.permute.xlu0 %755
      %759 = vrot.lane.b32.xlu0 %v747, 24
      %v760 = vpop.permute.xlu0 %759
      %v762 = vsel %vm527, %v578, %v752
      %vm763 = vcmask 130048
      %v764 = vsel %vm763, %v762, %v756
      %vm765 = vcmask 195584
      %v766 = vsel %vm765, %v764, %v760
      %v767 = vpack.c.bf16 %v766, %v766
      %v768 = vld [vmem:[%s4] sm:$0xf]
      %v769 = vld [vmem:[%s4 + $0x4] sm:$0xf]
      %v770 = vld [vmem:[%s4 + $0x8] sm:$0xf]
      %v771 = vld [vmem:[%s4 + $0xc] sm:$0xf]
      %v772 = vld [vmem:[%s5] sm:$0x1]
      %v774 = vperm.slane %v772, 0
      %v780 = vunpack.c.l.b16 %v768
      %v781 = vunpack.c.l.b16 %v769
      %v782 = vunpack.c.l.b16 %v770
      %v783 = vunpack.c.l.b16 %v771
      %v784 = vpack.c.b16 %v781, %v780
      %v785 = vpack.c.b16 %v783, %v782
      %v789 = vsel %vm504, %v767, 0
      %791 = vmatpush.bf16.msra.mxu0 0
      %792 = vmatpush.bf16.msra.mxu0 0
      %793 = vmatpush.bf16.msra.mxu0 0
      %794 = vmatpush.bf16.msra.mxu0 0
      %795 = vmatpush.bf16.msra.mxu0 0
      %796 = vmatpush.bf16.msra.mxu0 0
      %797 = vmatpush.bf16.msra.mxu0 %v785
      %798 = vmatpush.bf16.msra.mxu0 %v784
      %799 = vmatmul.bf16.gmra.mxu0 %v789
      %v800 = vpop.f32.mrf.mxu0
      %v801 = vadd.f32 %v774, %v800
      %v802 = vpop.f32.mrf.mxu0
      %803 = vdwg.mxu0
      %v804 = vadd.f32 %v801, %v481
      %v805 = vld [vmem:[%s6] sm:$0x1]
      %v806 = vld [vmem:[%s7] sm:$0x1]
      %v807 = vsel %vm504, %v804, 0.0
      %808 = vadd.xlane.f32.xlu0 %v807
      %v809 = vpop.xlane.xlu0 %808
      %v810 = vrcp.pop 32.0
      %v811 = vmul.f32 32.0, %v810
      %v812 = vsub.f32 1.0, %v811
      %v813 = vmul.f32 %v810, %v812
      %v814 = vadd.f32 %v810, %v813
      %vm815 = vweird.f32 %v810
      %v816 = vsel %vm815, %v810, %v814
      %v817 = vmul.f32 %v809, %v816
      %v818 = vsub.f32 %v804, %v817
      %v819 = vmul.f32 %v818, %v818
      %v820 = vsel %vm504, %v819, 0.0
      %821 = vadd.xlane.f32.xlu0 %v820
      %v822 = vpop.xlane.xlu0 %821
      %v823 = vmul.f32 %v822, %v816
      %v824 = vadd.f32 %v823, 1e-05
      %v825 = vrsqrt.pop %v824
      %v826 = vmul.f32 %v825, %v824
      %v827 = vmul.f32 %v826, %v825
      %v828 = vmul.f32 0.5, %v827
      %v829 = vsub.f32 1.5, %v828
      %v830 = vmul.f32 %v825, %v829
      %vm831 = vweird.f32 %v824
      %vm832 = vweird.f32 %v825
      %vm833 = vmor %vm831, %vm832
      %v834 = vsel %vm833, %v825, %v830
      %v835 = vmul.f32 %v818, %v834
      %v837 = vperm.slane %v805, 0
      %v839 = vmul.f32 %v835, %v837
      %v841 = vperm.slane %v806, 0
      %v843 = vadd.f32 %v839, %v841
      %v844 = vpack.c.bf16 %v843, %v843
      %v845 = vld [vmem:[%s8] sm:$0xf]
      %v846 = vld [vmem:[%s8 + $0x4] sm:$0xf]
      %v847 = vld [vmem:[%s8 + $0x8] sm:$0xf]
      %v848 = vld [vmem:[%s8 + $0xc] sm:$0xf]
      %v849 = vld [vmem:[%s9] sm:$0x1]
      %v851 = vperm.slane %v849, 0
      %v857 = vunpack.c.l.b16 %v845
      %v858 = vunpack.c.l.b16 %v846
      %v859 = vunpack.c.l.b16 %v847
      %v860 = vunpack.c.l.b16 %v848
      %v861 = vpack.c.b16 %v858, %v857
      %v862 = vpack.c.b16 %v860, %v859
      %v866 = vsel %vm504, %v844, 0
      %868 = vmatpush.bf16.msra.mxu0 0
      %869 = vmatpush.bf16.msra.mxu0 0
      %870 = vmatpush.bf16.msra.mxu0 0
      %871 = vmatpush.bf16.msra.mxu0 0
      %872 = vmatpush.bf16.msra.mxu0 0
      %873 = vmatpush.bf16.msra.mxu0 0
      %874 = vmatpush.bf16.msra.mxu0 %v862
      %875 = vmatpush.bf16.msra.mxu0 %v861
      %876 = vmatmul.bf16.gmra.mxu0 %v866
      %v877 = vpop.f32.mrf.mxu0
      %v878 = vadd.f32 %v851, %v877
      %v879 = vpop.f32.mrf.mxu0
      %880 = vdwg.mxu0
      %v881 = vmul.f32 %v878, %v878
      %v882 = vmul.f32 %v878, %v881
      %v883 = vmul.f32 %v882, 0.044715
      %v884 = vadd.f32 %v878, %v883
      %v885 = vmul.f32 %v884, 0.7978846
      %v886 = vtanh.pop %v885
      %v887 = vadd.f32 %v886, 1.0
      %v888 = vmul.f32 %v887, 0.5
      %v889 = vmul.f32 %v878, %v888
      %v890 = vpack.c.bf16 %v889, %v889
      %v891 = vld [vmem:[%s10] sm:$0xf]
      %v892 = vld [vmem:[%s10 + $0x4] sm:$0xf]
      %v893 = vld [vmem:[%s10 + $0x8] sm:$0xf]
      %v894 = vld [vmem:[%s10 + $0xc] sm:$0xf]
      %v895 = vld [vmem:[%s10 + $0x10] sm:$0xf]
      %v896 = vld [vmem:[%s10 + $0x14] sm:$0xf]
      %v897 = vld [vmem:[%s10 + $0x18] sm:$0xf]
      %v898 = vld [vmem:[%s10 + $0x1c] sm:$0xf]
      %v899 = vld [vmem:[%s11] sm:$0x1]
      %v901 = vperm.slane %v899, 0
      %v911 = vunpack.c.l.b16 %v891
      %v912 = vunpack.c.l.b16 %v892
      %v913 = vunpack.c.l.b16 %v893
      %v914 = vunpack.c.l.b16 %v894
      %v915 = vunpack.c.l.b16 %v895
      %v916 = vunpack.c.l.b16 %v896
      %v917 = vunpack.c.l.b16 %v897
      %v918 = vunpack.c.l.b16 %v898
      %v919 = vpack.c.b16 %v912, %v911
      %v920 = vpack.c.b16 %v914, %v913
      %v921 = vpack.c.b16 %v916, %v915
      %v922 = vpack.c.b16 %v918, %v917
      %vm927 = vcmask 523264
      %v929 = vsel %vm927, %v890, 0
      %931 = vmatpush.bf16.msra.mxu0 0
      %932 = vmatpush.bf16.msra.mxu0 0
      %933 = vmatpush.bf16.msra.mxu0 0
      %934 = vmatpush.bf16.msra.mxu0 0
      %935 = vmatpush.bf16.msra.mxu0 %v922
      %936 = vmatpush.bf16.msra.mxu0 %v921
      %937 = vmatpush.bf16.msra.mxu0 %v920
      %938 = vmatpush.bf16.msra.mxu0 %v919
      %939 = vmatmul.bf16.gmra.mxu0 %v929
      %v940 = vpop.f32.mrf.mxu0
      %v941 = vadd.f32 %v901, %v940
      %v942 = vpop.f32.mrf.mxu0
      %943 = vdwg.mxu0
      %v944 = vadd.f32 %v941, %v843
      %v945 = vld [vmem:[%s12] sm:$0x1]
      %v946 = vld [vmem:[%s13] sm:$0x1]
      %v947 = vsel %vm504, %v944, 0.0
      %948 = vadd.xlane.f32.xlu0 %v947
      %v949 = vpop.xlane.xlu0 %948
      %v950 = vmul.f32 %v949, %v816
      %v951 = vsub.f32 %v944, %v950
      %v952 = vmul.f32 %v951, %v951
      %v953 = vsel %vm504, %v952, 0.0
      %954 = vadd.xlane.f32.xlu0 %v953
      %v955 = vpop.xlane.xlu0 %954
      %v956 = vmul.f32 %v955, %v816
      %v957 = vadd.f32 %v956, 1e-05
      %v958 = vrsqrt.pop %v957
      %v959 = vmul.f32 %v958, %v957
      %v960 = vmul.f32 %v959, %v958
      %v961 = vmul.f32 0.5, %v960
      %v962 = vsub.f32 1.5, %v961
      %v963 = vmul.f32 %v958, %v962
      %vm964 = vweird.f32 %v957
      %vm965 = vweird.f32 %v958
      %vm966 = vmor %vm964, %vm965
      %v967 = vsel %vm966, %v958, %v963
      %v968 = vmul.f32 %v951, %v967
      %v970 = vperm.slane %v945, 0
      %v972 = vmul.f32 %v968, %v970
      %v974 = vperm.slane %v946, 0
      %v976 = vadd.f32 %v972, %v974
      %977 = vst.msk [vmem:[%s479] sm:$0xff] %vm504, %v976
      %p978 = scmp.lt.s32.totalorder %s25, 1
      %s979 = scalar_select %p978, %s25, 1
      %s980 = smul.addr %s979, 8
      %s981 = scalar_lea.vmem %s14, %s980
      // Predicated region
      $region77: #{_lambda_.5} parent=75 // pred_check
        %p982 = pneg %p347
      $region78: #{_lambda_.5} parent=75 // pred_check_branch
        %984 = sbr.rel (%p982) target = $region80
      $region79: #{_lambda_.5} parent=75 // pred_region
        _
      $region80: #{_lambda_.5} parent=75 // pred_fallthru
        _
    $region76: #{_lambda_.5} parent=5 // pred_fallthru
      _
    %p985 = scmp.le.s32.totalorder 2, %s20
    // Predicated region
    $region81: #{_lambda_.5} parent=5 // pred_check
      %p986 = pneg %p985
    $region82: #{_lambda_.5} parent=5 // pred_check_branch
      %988 = sbr.rel (%p986) target = $region84
    $region83: #{_lambda_.5} parent=5 // pred_region
      %s989 = ssub.s32 %s20, 2
      // Predicated region
      $region85: #{_lambda_.5} parent=83 // pred_check
        %p990 = pneg %p353
      $region86: #{_lambda_.5} parent=83 // pred_check_branch
        %992 = sbr.rel (%p990) target = $region88
      $region87: #{_lambda_.5} parent=83 // pred_region
        %p993 = scmp.lt.s32.totalorder %s26, 1
        %s994 = scalar_select %p993, %s26, 1
        %s995 = smul.addr %s994, 8
        %s996 = scalar_lea.vmem %s14, %s995
      $region88: #{_lambda_.5} parent=83 // pred_fallthru
        _
    $region84: #{_lambda_.5} parent=5 // pred_fallthru
      _
  $region6: #{_lambda_.5} parent=0 // loop_footer
    %s24 = sadd.s32 1, %s20
  $region7: #{_lambda_.5} parent=0 // loop_footer_branch
    %19 = sbr.rel target = $region3
  $region8: #{_lambda_.5} parent=0 // loop_exit
    _

</llo_original>
